<compile_context>
chip_gen: v5e
topology: v5e:2x2
jax: 0.10.0
libtpu: 0.0.40
codegen_flags: <defaults>
</compile_context>

<pallas_src>
import jax
import jax.numpy as jnp
from jax.experimental import pallas as pl
from jax.experimental.pallas import tpu as pltpu

IN_PLANES = 2048          # Baseline.in_planes (fixed by the module)
BN_EPS = 1e-5             # nn.BatchNorm1d default eps


def _round_up(x, m):
    return -(-x // m) * m


def _vmem_capacity_bytes():
    try:
        return int(pltpu.get_tpu_info().vmem_capacity_bytes)
    except Exception:
        return 64 << 20   # conservative: v7x has 64 MiB VMEM per TensorCore


# ---------------------------------------------------------------------------
# Kernel (a): global average pool + folded BatchNorm1d (memory-bound streamer)
# ---------------------------------------------------------------------------
def gap_bn_kernel(x_ref, scale_ref, shift_ref, gf_ref, feat_ref):
    """x_ref: (tile_n, HW, C) feature-map tile; C on lanes, HW on sublanes."""
    x = x_ref[...].astype(jnp.float32)                       # f32 accumulation
    gf = jnp.sum(x, axis=1) * jnp.float32(1.0 / x.shape[1])  # sublane reduce -> (tile_n, C)
    feat = gf * scale_ref[...] + shift_ref[...]               # folded BN (inference)
    gf_ref[...] = gf.astype(gf_ref.dtype)
    feat_ref[...] = feat.astype(feat_ref.dtype)


# ---------------------------------------------------------------------------
# Kernel (b): bias-free classifier, feat @ W on the MXU in bf16 (f32 accum)
# ---------------------------------------------------------------------------
def classifier_kernel(feat_ref, w_ref, score_ref):
    f = feat_ref[...].astype(jnp.bfloat16)                    # (tile_m, C)
    score_ref[...] = jnp.dot(
        f, w_ref[...], preferred_element_type=jnp.float32
    ).astype(score_ref.dtype)


# ---------------------------------------------------------------------------
# Wrappers
# ---------------------------------------------------------------------------
def _gap_bn(x, scale, shift):
    """x: (N, HW, C).  Returns (global_features, features), both (N, C) f32."""
    N, HW, C = x.shape
    itemsize = jnp.dtype(x.dtype).itemsize

    vmem_cap = _vmem_capacity_bytes()
    # Per-buffer budget for the streamed x block: ~24 MiB on 128 MiB parts
    # (v5e/v6e), ~12 MiB on 64 MiB parts (v7x).
    x_budget = min(24 << 20, vmem_cap // 5)
    per_sample = _round_up(HW, 8) * C * itemsize
    tile_n = max(1, x_budget // per_sample)
    if tile_n >= N:
        tile_n = N                        # single block == full batch dim (legal)
    elif tile_n >= 8:
        tile_n = (tile_n // 8) * 8        # sublane-aligned batch tile
    else:
        tile_n = min(8, N)                # keep output second-minor dim 8-aligned
    grid = (pl.cdiv(N, tile_n),)

    x_block = tile_n * _round_up(HW, 8) * C * itemsize
    out_block = _round_up(tile_n, 8) * C * 4
    vmem_est = 2 * x_block + 4 * out_block + 4 * C * 4 + (2 << 20)
    vmem_limit = int(min(max(vmem_est, 16 << 20),
                         max(vmem_cap - (8 << 20), 32 << 20)))

    gf, feat = pl.pallas_call(
        gap_bn_kernel,
        out_shape=(jax.ShapeDtypeStruct((N, C), jnp.float32),
                   jax.ShapeDtypeStruct((N, C), jnp.float32)),
        grid=grid,
        in_specs=[
            pl.BlockSpec((tile_n, HW, C), lambda i: (i, 0, 0)),   # x tile
            pl.BlockSpec((1, C), lambda i: (0, 0)),               # BN scale
            pl.BlockSpec((1, C), lambda i: (0, 0)),               # BN shift
        ],
        out_specs=(
            pl.BlockSpec((tile_n, C), lambda i: (i, 0)),          # global_features
            pl.BlockSpec((tile_n, C), lambda i: (i, 0)),          # features
        ),
        compiler_params=pltpu.CompilerParams(
            dimension_semantics=("parallel",),
            vmem_limit_bytes=vmem_limit),
    )(x, scale, shift)
    return gf, feat


def _pick_tile_nc(num_classes):
    """Largest class tile in {512, 384, 256, 128} that adds no padding beyond
    the mandatory 128-lane alignment (e.g. 751 -> 256, pad 768 instead of 1024)."""
    nc128 = _round_up(num_classes, 128)
    for cand in (512, 384, 256, 128):
        if _round_up(num_classes, cand) == nc128:
            return cand
    return 128


@jax.jit
def baseline_head_forward(x_nhwc, gamma, beta, running_mean, running_var, w_cls):
    """Baseline.forward head, starting from the backbone feature map.

    x_nhwc: (N, H, W, 2048) backbone feature map, channels-last (TPU-native;
            equals the PyTorch NCHW tensor transposed to (0, 2, 3, 1)).
    w_cls:  (2048, num_classes) classifier weight (nn.Linear weight transposed).
    Returns (cls_score, global_features, features) like Baseline.forward.
    """
    N, H, W, C = x_nhwc.shape
    num_classes = w_cls.shape[1]
    HW = H * W

    # Free reshape: spatial dims merge onto the sublane axis, C stays on lanes.
    x = x_nhwc.reshape(N, HW, C)

    # Fold BatchNorm1d (inference / running statistics) into scale & shift.
    scale = (gamma * jax.lax.rsqrt(running_var + BN_EPS)).astype(jnp.float32)
    shift = (beta - running_mean * scale).astype(jnp.float32)
    scale = scale.reshape(1, C)
    shift = shift.reshape(1, C)

    gf, feat = _gap_bn(x, scale, shift)

    # ---- classifier: feat @ W, bf16 operands, f32 accumulation -------------
    tile_nc = _pick_tile_nc(num_classes)
    nc_pad = _round_up(num_classes, tile_nc)
    w = w_cls.astype(jnp.bfloat16)                 # halves the weight HBM stream
    if nc_pad != num_classes:
        w = jnp.pad(w, ((0, 0), (0, nc_pad - num_classes)))   # tiny tensor

    tile_m = N if N <= 256 else 256
    grid = (pl.cdiv(N, tile_m), nc_pad // tile_nc)

    vmem_cap = _vmem_capacity_bytes()
    vmem_est = (2 * _round_up(tile_m, 8) * C * 4            # feat (double-buffered)
                + 2 * C * tile_nc * 2                        # weight (bf16)
                + 2 * _round_up(tile_m, 8) * tile_nc * 4     # score
                + (2 << 20))
    vmem_limit = int(min(max(vmem_est, 16 << 20),
                         max(vmem_cap - (8 << 20), 32 << 20)))

    score = pl.pallas_call(
        classifier_kernel,
        out_shape=jax.ShapeDtypeStruct((N, nc_pad), jnp.float32),
        grid=grid,
        in_specs=[
            pl.BlockSpec((tile_m, C), lambda i, j: (i, 0)),       # features
            pl.BlockSpec((C, tile_nc), lambda i, j: (0, j)),      # weight tile
        ],
        out_specs=pl.BlockSpec((tile_m, tile_nc), lambda i, j: (i, j)),
        compiler_params=pltpu.CompilerParams(
            dimension_semantics=("parallel", "parallel"),          # no deps; both axes parallel
            vmem_limit_bytes=vmem_limit),
    )(feat, w)

    return score[:, :num_classes], gf, feat


def init_params(num_classes, key):
    """Parameter init matching Baseline.__init__ semantics."""
    # weights_init_kaiming on BatchNorm1d: weight=1, bias=0 (bias frozen);
    # running stats at their defaults.
    gamma = jnp.ones((IN_PLANES,), jnp.float32)
    beta = jnp.zeros((IN_PLANES,), jnp.float32)
    running_mean = jnp.zeros((IN_PLANES,), jnp.float32)
    running_var = jnp.ones((IN_PLANES,), jnp.float32)
    # weights_init_classifier: normal(std=0.001), no bias.  Stored as
    # (C, num_classes); an nn.Linear checkpoint ((num_classes, C)) must be
    # transposed before being passed here.
    w_cls = 0.001 * jax.random.normal(key, (IN_PLANES, num_classes), jnp.float32)
    return gamma, beta, running_mean, running_var, w_cls


if __name__ == "__main__":
    key = jax.random.PRNGKey(0)
    k_x, k_w = jax.random.split(key)

    # Small shapes: batch=2, channels fixed at 2048 (module constant),
    # spatial 8x8, num_classes=16.  x stands in for the ResNet backbone output
    # in channels-last (TPU-native) layout.
    N, H, W = 2, 8, 8
    num_classes = 16
    x = jax.random.normal(k_x, (N, H, W, IN_PLANES), jnp.float32)

    gamma, beta, running_mean, running_var, w_cls = init_params(num_classes, k_w)

    cls_score, global_features, features = jax.block_until_ready(
        baseline_head_forward(x, gamma, beta, running_mean, running_var, w_cls))

    # Pure-JAX reference of the head math.
    gf_ref = jnp.mean(x, axis=(1, 2))                                        # GAP
    feat_ref = (gf_ref - running_mean) * gamma / jnp.sqrt(running_var + BN_EPS) + beta
    score_ref_f32 = feat_ref @ w_cls                                         # f32 classifier
    score_ref_bf16 = jnp.dot(feat_ref.astype(jnp.bfloat16),                  # bf16 classifier
                             w_cls.astype(jnp.bfloat16),
                             preferred_element_type=jnp.float32)

    assert cls_score.shape == (N, num_classes)
    assert global_features.shape == (N, IN_PLANES)
    assert features.shape == (N, IN_PLANES)
    assert jnp.allclose(global_features, gf_ref, atol=1e-4)
    assert jnp.allclose(features, feat_ref, atol=1e-4)
    assert jnp.allclose(cls_score, score_ref_bf16, atol=5e-4)   # matches bf16 classifier math
    assert jnp.allclose(cls_score, score_ref_f32, atol=5e-3)    # close to the f32 reference

    print("KERNEL_OK")
</pallas_src>

<mosaic_0001>
module attributes {stable_mosaic.version = 11 : i64} {
  func.func @gap_bn_kernel(%arg0: i32, %arg1: memref<2x64x2048xf32, #tpu.memory_space<vmem>>, %arg2: memref<1x2048xf32, #tpu.memory_space<vmem>>, %arg3: memref<1x2048xf32, #tpu.memory_space<vmem>>, %arg4: memref<2x2048xf32, #tpu.memory_space<vmem>>, %arg5: memref<2x2048xf32, #tpu.memory_space<vmem>>) attributes {dimension_semantics = [#tpu.dimension_semantics<parallel>], iteration_bounds = array<i64: 1>, scalar_prefetch = 0 : i64, scratch_operands = 0 : i64, tpu.core_type = #tpu.core_type<tc>, window_params = [{transform_indices = @transform_0, window_bounds = array<i64: 2, 64, 2048>}, {pipeline_mode = #tpu.pipeline_mode<synchronous>, transform_indices = @transform_1, window_bounds = array<i64: 1, 2048>}, {pipeline_mode = #tpu.pipeline_mode<synchronous>, transform_indices = @transform_2, window_bounds = array<i64: 1, 2048>}, {transform_indices = @transform_3, window_bounds = array<i64: 2, 2048>}, {transform_indices = @transform_4, window_bounds = array<i64: 2, 2048>}]} {
    %c0 = arith.constant 0 : index
    %c0_0 = arith.constant 0 : index
    %c0_1 = arith.constant 0 : index
    %0 = vector.load %arg1[%c0, %c0_0, %c0_1] : memref<2x64x2048xf32, #tpu.memory_space<vmem>>, vector<2x64x2048xf32>
    %cst = arith.constant dense<0.000000e+00> : vector<2x2048xf32>
    %1 = vector.multi_reduction <add>, %0, %cst [1] : vector<2x64x2048xf32> to vector<2x2048xf32>
    %cst_2 = arith.constant 1.562500e-02 : f32
    %2 = vector.broadcast %cst_2 : f32 to vector<2x2048xf32>
    %3 = arith.mulf %1, %2 : vector<2x2048xf32>
    %c0_3 = arith.constant 0 : index
    %c0_4 = arith.constant 0 : index
    %4 = vector.load %arg2[%c0_3, %c0_4] : memref<1x2048xf32, #tpu.memory_space<vmem>>, vector<1x2048xf32>
    %5 = vector.broadcast %4 : vector<1x2048xf32> to vector<2x2048xf32>
    %6 = arith.mulf %3, %5 : vector<2x2048xf32>
    %c0_5 = arith.constant 0 : index
    %c0_6 = arith.constant 0 : index
    %7 = vector.load %arg3[%c0_5, %c0_6] : memref<1x2048xf32, #tpu.memory_space<vmem>>, vector<1x2048xf32>
    %8 = vector.broadcast %7 : vector<1x2048xf32> to vector<2x2048xf32>
    %9 = arith.addf %6, %8 : vector<2x2048xf32>
    %c0_7 = arith.constant 0 : index
    %c0_8 = arith.constant 0 : index
    %10 = vector.load %arg4[%c0_7, %c0_8] : memref<2x2048xf32, #tpu.memory_space<vmem>>, vector<2x2048xf32>
    tpu.vector_store %arg4[%c0_7, %c0_8], %3 {strides = array<i32>} : memref<2x2048xf32, #tpu.memory_space<vmem>>, vector<2x2048xf32>,
    %c0_9 = arith.constant 0 : index
    %c0_10 = arith.constant 0 : index
    %11 = vector.load %arg5[%c0_9, %c0_10] : memref<2x2048xf32, #tpu.memory_space<vmem>>, vector<2x2048xf32>
    tpu.vector_store %arg5[%c0_9, %c0_10], %9 {strides = array<i32>} : memref<2x2048xf32, #tpu.memory_space<vmem>>, vector<2x2048xf32>,
    return
  }
  func.func @transform_0(%arg0: i32) -> (i32, i32, i32) {
    %c0_i32 = arith.constant 0 : i32
    %c0_i32_0 = arith.constant 0 : i32
    %c0_i32_1 = arith.constant 0 : i32
    return %arg0, %c0_i32, %c0_i32_0 : i32, i32, i32
  }
  func.func @transform_1(%arg0: i32) -> (i32, i32) {
    %c0_i32 = arith.constant 0 : i32
    %c0_i32_0 = arith.constant 0 : i32
    %c0_i32_1 = arith.constant 0 : i32
    return %c0_i32, %c0_i32_0 : i32, i32
  }
  func.func @transform_2(%arg0: i32) -> (i32, i32) {
    %c0_i32 = arith.constant 0 : i32
    %c0_i32_0 = arith.constant 0 : i32
    %c0_i32_1 = arith.constant 0 : i32
    return %c0_i32, %c0_i32_0 : i32, i32
  }
  func.func @transform_3(%arg0: i32) -> (i32, i32) {
    %c0_i32 = arith.constant 0 : i32
    %c0_i32_0 = arith.constant 0 : i32
    return %arg0, %c0_i32 : i32, i32
  }
  func.func @transform_4(%arg0: i32) -> (i32, i32) {
    %c0_i32 = arith.constant 0 : i32
    %c0_i32_0 = arith.constant 0 : i32
    return %arg0, %c0_i32 : i32, i32
  }
}

module attributes {stable_mosaic.version = 11 : i64} {
  func.func @classifier_kernel(%arg0: i32, %arg1: i32, %arg2: memref<2x2048xf32, #tpu.memory_space<vmem>>, %arg3: memref<2048x128xbf16, #tpu.memory_space<vmem>>, %arg4: memref<2x128xf32, #tpu.memory_space<vmem>>) attributes {dimension_semantics = [#tpu.dimension_semantics<parallel>, #tpu.dimension_semantics<parallel>], iteration_bounds = array<i64: 1, 1>, scalar_prefetch = 0 : i64, scratch_operands = 0 : i64, tpu.core_type = #tpu.core_type<tc>, window_params = [{transform_indices = @transform_0, window_bounds = array<i64: 2, 2048>}, {transform_indices = @transform_1, window_bounds = array<i64: 2048, 128>}, {transform_indices = @transform_2, window_bounds = array<i64: 2, 128>}]} {
    %c0 = arith.constant 0 : index
    %c0_0 = arith.constant 0 : index
    %0 = vector.load %arg2[%c0, %c0_0] : memref<2x2048xf32, #tpu.memory_space<vmem>>, vector<2x2048xf32>
    %1 = arith.truncf %0 : vector<2x2048xf32> to vector<2x2048xbf16>
    %c0_1 = arith.constant 0 : index
    %c0_2 = arith.constant 0 : index
    %2 = vector.load %arg3[%c0_1, %c0_2] : memref<2048x128xbf16, #tpu.memory_space<vmem>>, vector<2048x128xbf16>
    %cst = arith.constant dense<0.000000e+00> : vector<2x128xf32>
    %3 = tpu.matmul %1, %2, %cst {dimension_numbers = #tpu.dot_dimension_numbers<[1], [0], [0], [1], [0, 0, 1, 1], [], []>} : vector<2x2048xbf16>, vector<2048x128xbf16>, vector<2x128xf32> -> vector<2x128xf32>
    %c0_3 = arith.constant 0 : index
    %c0_4 = arith.constant 0 : index
    %4 = vector.load %arg4[%c0_3, %c0_4] : memref<2x128xf32, #tpu.memory_space<vmem>>, vector<2x128xf32>
    tpu.vector_store %arg4[%c0_3, %c0_4], %3 {strides = array<i32>} : memref<2x128xf32, #tpu.memory_space<vmem>>, vector<2x128xf32>,
    return
  }
  func.func @transform_0(%arg0: i32, %arg1: i32) -> (i32, i32) {
    %c0_i32 = arith.constant 0 : i32
    %c0_i32_0 = arith.constant 0 : i32
    return %arg0, %c0_i32 : i32, i32
  }
  func.func @transform_1(%arg0: i32, %arg1: i32) -> (i32, i32) {
    %c0_i32 = arith.constant 0 : i32
    %c0_i32_0 = arith.constant 0 : i32
    return %c0_i32, %arg1 : i32, i32
  }
  func.func @transform_2(%arg0: i32, %arg1: i32) -> (i32, i32) {
    %c0_i32 = arith.constant 0 : i32
    return %arg0, %arg1 : i32, i32
  }
}

</mosaic_0001>

<llo_original>
// kernel: baseline_head_forward.2
$region0: #{baseline_head_forward.2}
  #allocation0 [shape = 'u32[]', space=smem, size = 0x4, offset = 0x4, fixed_abs, tag = 'smem constant byte address 0x4 - core index']
  #allocation1 [shape = 'u32[72,128]{1,0:T(1,128)}', space=vmem, size = 0x9000, scoped, tag = 'internal scratch']
  %s0 = inlined_call_operand.hbm [shape: f32[2,64,2048], index: 0, kind: input, shape index: {}]
  %s1 = inlined_call_operand.vmem [shape: f32[1,2048], index: 1, kind: input, shape index: {}]
  %s2 = inlined_call_operand.vmem [shape: f32[1,2048], index: 2, kind: input, shape index: {}]
  %s3 = inlined_call_operand.hbm [shape: f32[2,2048], index: 3, kind: output, shape index: {0}]
  %s4 = inlined_call_operand.vmem [shape: f32[2,2048], index: 4, kind: output, shape index: {1}]
  %5 = xla_tuple %s3, %s4
  %s6 = sld [smem:[#allocation0]]
  $region34: #{baseline_head_forward.2} parent=0
    _
  %s8 = ssub.s32 1, %s6
  %s9 = scalar_select 0, %s8, %s6
  $region1: #{baseline_head_forward.2} parent=0
    #allocation2 [shape = 'u8[1048576]{0}', space=vmem, size = 0x100000, scoped, tag = 'input window, operand 0, single buffered']
    #allocation3 [shape = 's32[1]{0}', space=sflag, size = 0x4, scoped, tag = 'scoped memory for baseline_head_forward.2']
    #allocation4 [shape = 's32[1]{0}', space=sflag, size = 0x4, scoped, tag = 'scoped memory for baseline_head_forward.2']
    #allocation5 [shape = 'u8[16384]{0}', space=vmem, size = 0x4000, scoped, tag = 'output window, operand 0, single buffered']
    %10 = vsyncpa [#allocation3], 0
    %11 = vsyncpa [#allocation4], 0
    // Predicated region
    $region2: #{baseline_head_forward.2} parent=1 // pred_check
      _
    $region3: #{baseline_head_forward.2} parent=1 // pred_check_branch
      %13 = sbr.rel (0) target = $region5
    $region4: #{baseline_head_forward.2} parent=1 // pred_region
      %15 = vsyncadd [#allocation3], 0
      %s16 = sshll.u32 %s0, 4
      %s17 = int_to_ptr.hbm [resolvable:$true] %s16
      %s18 = sshll.u32 [#allocation2], 4
      %s19 = int_to_ptr.vmem [resolvable:$true] %s18
      %24 = dma.hbm_to_vmem [thread:$0]  %s17, 32768, %s19, [#allocation3], 2048, 2048, 128
    $region5: #{baseline_head_forward.2} parent=1 // pred_fallthru
      _
    // Predicated region
    $region6: #{baseline_head_forward.2} parent=1 // pred_check
      _
    $region7: #{baseline_head_forward.2} parent=1 // pred_check_branch
      %26 = sbr.rel (0) target = $region9
    $region8: #{baseline_head_forward.2} parent=1 // pred_region
      _
    $region9: #{baseline_head_forward.2} parent=1 // pred_fallthru
      _
    // Predicated region
    $region10: #{baseline_head_forward.2} parent=1 // pred_check
      _
    $region11: #{baseline_head_forward.2} parent=1 // pred_check_branch
      %28 = sbr.rel (0) target = $region13
    $region12: #{baseline_head_forward.2} parent=1 // pred_region
      _
    $region13: #{baseline_head_forward.2} parent=1 // pred_fallthru
      _
    // Predicated region
    $region14: #{baseline_head_forward.2} parent=1 // pred_check
      _
    $region15: #{baseline_head_forward.2} parent=1 // pred_check_branch
      %30 = sbr.rel (0) target = $region17
    $region16: #{baseline_head_forward.2} parent=1 // pred_region
      %32 = dma.done [#allocation3], 32768
    $region17: #{baseline_head_forward.2} parent=1 // pred_fallthru
      _
    %v33 = vld [vmem:[#allocation2] sm:$0xff]
    %v34 = vld [vmem:[#allocation2 + $0x8] sm:$0xff]
    %v35 = vld [vmem:[#allocation2 + $0x10] sm:$0xff]
    %v36 = vld [vmem:[#allocation2 + $0x18] sm:$0xff]
    %v37 = vld [vmem:[#allocation2 + $0x20] sm:$0xff]
    %v38 = vld [vmem:[#allocation2 + $0x28] sm:$0xff]
    %v39 = vld [vmem:[#allocation2 + $0x30] sm:$0xff]
    %v40 = vld [vmem:[#allocation2 + $0x38] sm:$0xff]
    %v41 = vld [vmem:[#allocation2 + $0x40] sm:$0xff]
    %v42 = vld [vmem:[#allocation2 + $0x48] sm:$0xff]
    %v43 = vld [vmem:[#allocation2 + $0x50] sm:$0xff]
    %v44 = vld [vmem:[#allocation2 + $0x58] sm:$0xff]
    %v45 = vld [vmem:[#allocation2 + $0x60] sm:$0xff]
    %v46 = vld [vmem:[#allocation2 + $0x68] sm:$0xff]
    %v47 = vld [vmem:[#allocation2 + $0x70] sm:$0xff]
    %v48 = vld [vmem:[#allocation2 + $0x78] sm:$0xff]
    %v49 = vld [vmem:[#allocation2 + $0x80] sm:$0xff]
    %v50 = vld [vmem:[#allocation2 + $0x88] sm:$0xff]
    %v51 = vld [vmem:[#allocation2 + $0x90] sm:$0xff]
    %v52 = vld [vmem:[#allocation2 + $0x98] sm:$0xff]
    %v53 = vld [vmem:[#allocation2 + $0xa0] sm:$0xff]
    %v54 = vld [vmem:[#allocation2 + $0xa8] sm:$0xff]
    %v55 = vld [vmem:[#allocation2 + $0xb0] sm:$0xff]
    %v56 = vld [vmem:[#allocation2 + $0xb8] sm:$0xff]
    %v57 = vld [vmem:[#allocation2 + $0xc0] sm:$0xff]
    %v58 = vld [vmem:[#allocation2 + $0xc8] sm:$0xff]
    %v59 = vld [vmem:[#allocation2 + $0xd0] sm:$0xff]
    %v60 = vld [vmem:[#allocation2 + $0xd8] sm:$0xff]
    %v61 = vld [vmem:[#allocation2 + $0xe0] sm:$0xff]
    %v62 = vld [vmem:[#allocation2 + $0xe8] sm:$0xff]
    %v63 = vld [vmem:[#allocation2 + $0xf0] sm:$0xff]
    %v64 = vld [vmem:[#allocation2 + $0xf8] sm:$0xff]
    %v65 = vld [vmem:[#allocation2 + $0x100] sm:$0xff]
    %v66 = vld [vmem:[#allocation2 + $0x108] sm:$0xff]
    %v67 = vld [vmem:[#allocation2 + $0x110] sm:$0xff]
    %v68 = vld [vmem:[#allocation2 + $0x118] sm:$0xff]
    %v69 = vld [vmem:[#allocation2 + $0x120] sm:$0xff]
    %v70 = vld [vmem:[#allocation2 + $0x128] sm:$0xff]
    %v71 = vld [vmem:[#allocation2 + $0x130] sm:$0xff]
    %v72 = vld [vmem:[#allocation2 + $0x138] sm:$0xff]
    %v73 = vld [vmem:[#allocation2 + $0x140] sm:$0xff]
    %v74 = vld [vmem:[#allocation2 + $0x148] sm:$0xff]
    %v75 = vld [vmem:[#allocation2 + $0x150] sm:$0xff]
    %v76 = vld [vmem:[#allocation2 + $0x158] sm:$0xff]
    %v77 = vld [vmem:[#allocation2 + $0x160] sm:$0xff]
    %v78 = vld [vmem:[#allocation2 + $0x168] sm:$0xff]
    %v79 = vld [vmem:[#allocation2 + $0x170] sm:$0xff]
    %v80 = vld [vmem:[#allocation2 + $0x178] sm:$0xff]
    %v81 = vld [vmem:[#allocation2 + $0x180] sm:$0xff]
    %v82 = vld [vmem:[#allocation2 + $0x188] sm:$0xff]
    %v83 = vld [vmem:[#allocation2 + $0x190] sm:$0xff]
    %v84 = vld [vmem:[#allocation2 + $0x198] sm:$0xff]
    %v85 = vld [vmem:[#allocation2 + $0x1a0] sm:$0xff]
    %v86 = vld [vmem:[#allocation2 + $0x1a8] sm:$0xff]
    %v87 = vld [vmem:[#allocation2 + $0x1b0] sm:$0xff]
    %v88 = vld [vmem:[#allocation2 + $0x1b8] sm:$0xff]
    %v89 = vld [vmem:[#allocation2 + $0x1c0] sm:$0xff]
    %v90 = vld [vmem:[#allocation2 + $0x1c8] sm:$0xff]
    %v91 = vld [vmem:[#allocation2 + $0x1d0] sm:$0xff]
    %v92 = vld [vmem:[#allocation2 + $0x1d8] sm:$0xff]
    %v93 = vld [vmem:[#allocation2 + $0x1e0] sm:$0xff]
    %v94 = vld [vmem:[#allocation2 + $0x1e8] sm:$0xff]
    %v95 = vld [vmem:[#allocation2 + $0x1f0] sm:$0xff]
    %v96 = vld [vmem:[#allocation2 + $0x1f8] sm:$0xff]
    %v97 = vld [vmem:[#allocation2 + $0x200] sm:$0xff]
    %v98 = vld [vmem:[#allocation2 + $0x208] sm:$0xff]
    %v99 = vld [vmem:[#allocation2 + $0x210] sm:$0xff]
    %v100 = vld [vmem:[#allocation2 + $0x218] sm:$0xff]
    %v101 = vld [vmem:[#allocation2 + $0x220] sm:$0xff]
    %v102 = vld [vmem:[#allocation2 + $0x228] sm:$0xff]
    %v103 = vld [vmem:[#allocation2 + $0x230] sm:$0xff]
    %v104 = vld [vmem:[#allocation2 + $0x238] sm:$0xff]
    %v105 = vld [vmem:[#allocation2 + $0x240] sm:$0xff]
    %v106 = vld [vmem:[#allocation2 + $0x248] sm:$0xff]
    %v107 = vld [vmem:[#allocation2 + $0x250] sm:$0xff]
    %v108 = vld [vmem:[#allocation2 + $0x258] sm:$0xff]
    %v109 = vld [vmem:[#allocation2 + $0x260] sm:$0xff]
    %v110 = vld [vmem:[#allocation2 + $0x268] sm:$0xff]
    %v111 = vld [vmem:[#allocation2 + $0x270] sm:$0xff]
    %v112 = vld [vmem:[#allocation2 + $0x278] sm:$0xff]
    %v113 = vld [vmem:[#allocation2 + $0x280] sm:$0xff]
    %v114 = vld [vmem:[#allocation2 + $0x288] sm:$0xff]
    %v115 = vld [vmem:[#allocation2 + $0x290] sm:$0xff]
    %v116 = vld [vmem:[#allocation2 + $0x298] sm:$0xff]
    %v117 = vld [vmem:[#allocation2 + $0x2a0] sm:$0xff]
    %v118 = vld [vmem:[#allocation2 + $0x2a8] sm:$0xff]
    %v119 = vld [vmem:[#allocation2 + $0x2b0] sm:$0xff]
    %v120 = vld [vmem:[#allocation2 + $0x2b8] sm:$0xff]
    %v121 = vld [vmem:[#allocation2 + $0x2c0] sm:$0xff]
    %v122 = vld [vmem:[#allocation2 + $0x2c8] sm:$0xff]
    %v123 = vld [vmem:[#allocation2 + $0x2d0] sm:$0xff]
    %v124 = vld [vmem:[#allocation2 + $0x2d8] sm:$0xff]
    %v125 = vld [vmem:[#allocation2 + $0x2e0] sm:$0xff]
    %v126 = vld [vmem:[#allocation2 + $0x2e8] sm:$0xff]
    %v127 = vld [vmem:[#allocation2 + $0x2f0] sm:$0xff]
    %v128 = vld [vmem:[#allocation2 + $0x2f8] sm:$0xff]
    %v129 = vld [vmem:[#allocation2 + $0x300] sm:$0xff]
    %v130 = vld [vmem:[#allocation2 + $0x308] sm:$0xff]
    %v131 = vld [vmem:[#allocation2 + $0x310] sm:$0xff]
    %v132 = vld [vmem:[#allocation2 + $0x318] sm:$0xff]
    %v133 = vld [vmem:[#allocation2 + $0x320] sm:$0xff]
    %v134 = vld [vmem:[#allocation2 + $0x328] sm:$0xff]
    %v135 = vld [vmem:[#allocation2 + $0x330] sm:$0xff]
    %v136 = vld [vmem:[#allocation2 + $0x338] sm:$0xff]
    %v137 = vld [vmem:[#allocation2 + $0x340] sm:$0xff]
    %v138 = vld [vmem:[#allocation2 + $0x348] sm:$0xff]
    %v139 = vld [vmem:[#allocation2 + $0x350] sm:$0xff]
    %v140 = vld [vmem:[#allocation2 + $0x358] sm:$0xff]
    %v141 = vld [vmem:[#allocation2 + $0x360] sm:$0xff]
    %v142 = vld [vmem:[#allocation2 + $0x368] sm:$0xff]
    %v143 = vld [vmem:[#allocation2 + $0x370] sm:$0xff]
    %v144 = vld [vmem:[#allocation2 + $0x378] sm:$0xff]
    %v145 = vld [vmem:[#allocation2 + $0x380] sm:$0xff]
    %v146 = vld [vmem:[#allocation2 + $0x388] sm:$0xff]
    %v147 = vld [vmem:[#allocation2 + $0x390] sm:$0xff]
    %v148 = vld [vmem:[#allocation2 + $0x398] sm:$0xff]
    %v149 = vld [vmem:[#allocation2 + $0x3a0] sm:$0xff]
    %v150 = vld [vmem:[#allocation2 + $0x3a8] sm:$0xff]
    %v151 = vld [vmem:[#allocation2 + $0x3b0] sm:$0xff]
    %v152 = vld [vmem:[#allocation2 + $0x3b8] sm:$0xff]
    %v153 = vld [vmem:[#allocation2 + $0x3c0] sm:$0xff]
    %v154 = vld [vmem:[#allocation2 + $0x3c8] sm:$0xff]
    %v155 = vld [vmem:[#allocation2 + $0x3d0] sm:$0xff]
    %v156 = vld [vmem:[#allocation2 + $0x3d8] sm:$0xff]
    %v157 = vld [vmem:[#allocation2 + $0x3e0] sm:$0xff]
    %v158 = vld [vmem:[#allocation2 + $0x3e8] sm:$0xff]
    %v159 = vld [vmem:[#allocation2 + $0x3f0] sm:$0xff]
    %v160 = vld [vmem:[#allocation2 + $0x3f8] sm:$0xff]
    %v161 = vld [vmem:[#allocation2 + $0x400] sm:$0xff]
    %v162 = vld [vmem:[#allocation2 + $0x408] sm:$0xff]
    %v163 = vld [vmem:[#allocation2 + $0x410] sm:$0xff]
    %v164 = vld [vmem:[#allocation2 + $0x418] sm:$0xff]
    %v165 = vld [vmem:[#allocation2 + $0x420] sm:$0xff]
    %v166 = vld [vmem:[#allocation2 + $0x428] sm:$0xff]
    %v167 = vld [vmem:[#allocation2 + $0x430] sm:$0xff]
    %v168 = vld [vmem:[#allocation2 + $0x438] sm:$0xff]
    %v169 = vld [vmem:[#allocation2 + $0x440] sm:$0xff]
    %v170 = vld [vmem:[#allocation2 + $0x448] sm:$0xff]
    %v171 = vld [vmem:[#allocation2 + $0x450] sm:$0xff]
    %v172 = vld [vmem:[#allocation2 + $0x458] sm:$0xff]
    %v173 = vld [vmem:[#allocation2 + $0x460] sm:$0xff]
    %v174 = vld [vmem:[#allocation2 + $0x468] sm:$0xff]
    %v175 = vld [vmem:[#allocation2 + $0x470] sm:$0xff]
    %v176 = vld [vmem:[#allocation2 + $0x478] sm:$0xff]
    %v177 = vld [vmem:[#allocation2 + $0x480] sm:$0xff]
    %v178 = vld [vmem:[#allocation2 + $0x488] sm:$0xff]
    %v179 = vld [vmem:[#allocation2 + $0x490] sm:$0xff]
    %v180 = vld [vmem:[#allocation2 + $0x498] sm:$0xff]
    %v181 = vld [vmem:[#allocation2 + $0x4a0] sm:$0xff]
    %v182 = vld [vmem:[#allocation2 + $0x4a8] sm:$0xff]
    %v183 = vld [vmem:[#allocation2 + $0x4b0] sm:$0xff]
    %v184 = vld [vmem:[#allocation2 + $0x4b8] sm:$0xff]
    %v185 = vld [vmem:[#allocation2 + $0x4c0] sm:$0xff]
    %v186 = vld [vmem:[#allocation2 + $0x4c8] sm:$0xff]
    %v187 = vld [vmem:[#allocation2 + $0x4d0] sm:$0xff]
    %v188 = vld [vmem:[#allocation2 + $0x4d8] sm:$0xff]
    %v189 = vld [vmem:[#allocation2 + $0x4e0] sm:$0xff]
    %v190 = vld [vmem:[#allocation2 + $0x4e8] sm:$0xff]
    %v191 = vld [vmem:[#allocation2 + $0x4f0] sm:$0xff]
    %v192 = vld [vmem:[#allocation2 + $0x4f8] sm:$0xff]
    %v193 = vld [vmem:[#allocation2 + $0x500] sm:$0xff]
    %v194 = vld [vmem:[#allocation2 + $0x508] sm:$0xff]
    %v195 = vld [vmem:[#allocation2 + $0x510] sm:$0xff]
    %v196 = vld [vmem:[#allocation2 + $0x518] sm:$0xff]
    %v197 = vld [vmem:[#allocation2 + $0x520] sm:$0xff]
    %v198 = vld [vmem:[#allocation2 + $0x528] sm:$0xff]
    %v199 = vld [vmem:[#allocation2 + $0x530] sm:$0xff]
    %v200 = vld [vmem:[#allocation2 + $0x538] sm:$0xff]
    %v201 = vld [vmem:[#allocation2 + $0x540] sm:$0xff]
    %v202 = vld [vmem:[#allocation2 + $0x548] sm:$0xff]
    %v203 = vld [vmem:[#allocation2 + $0x550] sm:$0xff]
    %v204 = vld [vmem:[#allocation2 + $0x558] sm:$0xff]
    %v205 = vld [vmem:[#allocation2 + $0x560] sm:$0xff]
    %v206 = vld [vmem:[#allocation2 + $0x568] sm:$0xff]
    %v207 = vld [vmem:[#allocation2 + $0x570] sm:$0xff]
    %v208 = vld [vmem:[#allocation2 + $0x578] sm:$0xff]
    %v209 = vld [vmem:[#allocation2 + $0x580] sm:$0xff]
    %v210 = vld [vmem:[#allocation2 + $0x588] sm:$0xff]
    %v211 = vld [vmem:[#allocation2 + $0x590] sm:$0xff]
    %v212 = vld [vmem:[#allocation2 + $0x598] sm:$0xff]
    %v213 = vld [vmem:[#allocation2 + $0x5a0] sm:$0xff]
    %v214 = vld [vmem:[#allocation2 + $0x5a8] sm:$0xff]
    %v215 = vld [vmem:[#allocation2 + $0x5b0] sm:$0xff]
    %v216 = vld [vmem:[#allocation2 + $0x5b8] sm:$0xff]
    %v217 = vld [vmem:[#allocation2 + $0x5c0] sm:$0xff]
    %v218 = vld [vmem:[#allocation2 + $0x5c8] sm:$0xff]
    %v219 = vld [vmem:[#allocation2 + $0x5d0] sm:$0xff]
    %v220 = vld [vmem:[#allocation2 + $0x5d8] sm:$0xff]
    %v221 = vld [vmem:[#allocation2 + $0x5e0] sm:$0xff]
    %v222 = vld [vmem:[#allocation2 + $0x5e8] sm:$0xff]
    %v223 = vld [vmem:[#allocation2 + $0x5f0] sm:$0xff]
    %v224 = vld [vmem:[#allocation2 + $0x5f8] sm:$0xff]
    %v225 = vld [vmem:[#allocation2 + $0x600] sm:$0xff]
    %v226 = vld [vmem:[#allocation2 + $0x608] sm:$0xff]
    %v227 = vld [vmem:[#allocation2 + $0x610] sm:$0xff]
    %v228 = vld [vmem:[#allocation2 + $0x618] sm:$0xff]
    %v229 = vld [vmem:[#allocation2 + $0x620] sm:$0xff]
    %v230 = vld [vmem:[#allocation2 + $0x628] sm:$0xff]
    %v231 = vld [vmem:[#allocation2 + $0x630] sm:$0xff]
    %v232 = vld [vmem:[#allocation2 + $0x638] sm:$0xff]
    %v233 = vld [vmem:[#allocation2 + $0x640] sm:$0xff]
    %v234 = vld [vmem:[#allocation2 + $0x648] sm:$0xff]
    %v235 = vld [vmem:[#allocation2 + $0x650] sm:$0xff]
    %v236 = vld [vmem:[#allocation2 + $0x658] sm:$0xff]
    %v237 = vld [vmem:[#allocation2 + $0x660] sm:$0xff]
    %v238 = vld [vmem:[#allocation2 + $0x668] sm:$0xff]
    %v239 = vld [vmem:[#allocation2 + $0x670] sm:$0xff]
    %v240 = vld [vmem:[#allocation2 + $0x678] sm:$0xff]
    %v241 = vld [vmem:[#allocation2 + $0x680] sm:$0xff]
    %v242 = vld [vmem:[#allocation2 + $0x688] sm:$0xff]
    %v243 = vld [vmem:[#allocation2 + $0x690] sm:$0xff]
    %v244 = vld [vmem:[#allocation2 + $0x698] sm:$0xff]
    %v245 = vld [vmem:[#allocation2 + $0x6a0] sm:$0xff]
    %v246 = vld [vmem:[#allocation2 + $0x6a8] sm:$0xff]
    %v247 = vld [vmem:[#allocation2 + $0x6b0] sm:$0xff]
    %v248 = vld [vmem:[#allocation2 + $0x6b8] sm:$0xff]
    %v249 = vld [vmem:[#allocation2 + $0x6c0] sm:$0xff]
    %v250 = vld [vmem:[#allocation2 + $0x6c8] sm:$0xff]
    %v251 = vld [vmem:[#allocation2 + $0x6d0] sm:$0xff]
    %v252 = vld [vmem:[#allocation2 + $0x6d8] sm:$0xff]
    %v253 = vld [vmem:[#allocation2 + $0x6e0] sm:$0xff]
    %v254 = vld [vmem:[#allocation2 + $0x6e8] sm:$0xff]
    %v255 = vld [vmem:[#allocation2 + $0x6f0] sm:$0xff]
    %v256 = vld [vmem:[#allocation2 + $0x6f8] sm:$0xff]
    %v257 = vld [vmem:[#allocation2 + $0x700] sm:$0xff]
    %v258 = vld [vmem:[#allocation2 + $0x708] sm:$0xff]
    %v259 = vld [vmem:[#allocation2 + $0x710] sm:$0xff]
    %v260 = vld [vmem:[#allocation2 + $0x718] sm:$0xff]
    %v261 = vld [vmem:[#allocation2 + $0x720] sm:$0xff]
    %v262 = vld [vmem:[#allocation2 + $0x728] sm:$0xff]
    %v263 = vld [vmem:[#allocation2 + $0x730] sm:$0xff]
    %v264 = vld [vmem:[#allocation2 + $0x738] sm:$0xff]
    %v265 = vld [vmem:[#allocation2 + $0x740] sm:$0xff]
    %v266 = vld [vmem:[#allocation2 + $0x748] sm:$0xff]
    %v267 = vld [vmem:[#allocation2 + $0x750] sm:$0xff]
    %v268 = vld [vmem:[#allocation2 + $0x758] sm:$0xff]
    %v269 = vld [vmem:[#allocation2 + $0x760] sm:$0xff]
    %v270 = vld [vmem:[#allocation2 + $0x768] sm:$0xff]
    %v271 = vld [vmem:[#allocation2 + $0x770] sm:$0xff]
    %v272 = vld [vmem:[#allocation2 + $0x778] sm:$0xff]
    %v273 = vld [vmem:[#allocation2 + $0x780] sm:$0xff]
    %v274 = vld [vmem:[#allocation2 + $0x788] sm:$0xff]
    %v275 = vld [vmem:[#allocation2 + $0x790] sm:$0xff]
    %v276 = vld [vmem:[#allocation2 + $0x798] sm:$0xff]
    %v277 = vld [vmem:[#allocation2 + $0x7a0] sm:$0xff]
    %v278 = vld [vmem:[#allocation2 + $0x7a8] sm:$0xff]
    %v279 = vld [vmem:[#allocation2 + $0x7b0] sm:$0xff]
    %v280 = vld [vmem:[#allocation2 + $0x7b8] sm:$0xff]
    %v281 = vld [vmem:[#allocation2 + $0x7c0] sm:$0xff]
    %v282 = vld [vmem:[#allocation2 + $0x7c8] sm:$0xff]
    %v283 = vld [vmem:[#allocation2 + $0x7d0] sm:$0xff]
    %v284 = vld [vmem:[#allocation2 + $0x7d8] sm:$0xff]
    %v285 = vld [vmem:[#allocation2 + $0x7e0] sm:$0xff]
    %v286 = vld [vmem:[#allocation2 + $0x7e8] sm:$0xff]
    %v287 = vld [vmem:[#allocation2 + $0x7f0] sm:$0xff]
    %v288 = vld [vmem:[#allocation2 + $0x7f8] sm:$0xff]
    %v289 = vadd.f32 %v33, %v49
    %v290 = vadd.f32 %v289, %v65
    %v291 = vadd.f32 %v290, %v81
    %v292 = vadd.f32 %v291, %v97
    %v293 = vadd.f32 %v292, %v113
    %v294 = vadd.f32 %v293, %v129
    %v295 = vadd.f32 %v294, %v145
    %v296 = vrot.slane %v295, 4
    %v297 = vadd.f32 %v295, %v296
    %v298 = vrot.slane %v297, 2
    %v299 = vadd.f32 %v297, %v298
    %v300 = vrot.slane %v299, 1
    %v301 = vadd.f32 %v299, %v300
    %v302 = vadd.f32 %v34, %v50
    %v303 = vadd.f32 %v302, %v66
    %v304 = vadd.f32 %v303, %v82
    %v305 = vadd.f32 %v304, %v98
    %v306 = vadd.f32 %v305, %v114
    %v307 = vadd.f32 %v306, %v130
    %v308 = vadd.f32 %v307, %v146
    %v309 = vrot.slane %v308, 4
    %v310 = vadd.f32 %v308, %v309
    %v311 = vrot.slane %v310, 2
    %v312 = vadd.f32 %v310, %v311
    %v313 = vrot.slane %v312, 1
    %v314 = vadd.f32 %v312, %v313
    %v315 = vadd.f32 %v35, %v51
    %v316 = vadd.f32 %v315, %v67
    %v317 = vadd.f32 %v316, %v83
    %v318 = vadd.f32 %v317, %v99
    %v319 = vadd.f32 %v318, %v115
    %v320 = vadd.f32 %v319, %v131
    %v321 = vadd.f32 %v320, %v147
    %v322 = vrot.slane %v321, 4
    %v323 = vadd.f32 %v321, %v322
    %v324 = vrot.slane %v323, 2
    %v325 = vadd.f32 %v323, %v324
    %v326 = vrot.slane %v325, 1
    %v327 = vadd.f32 %v325, %v326
    %v328 = vadd.f32 %v36, %v52
    %v329 = vadd.f32 %v328, %v68
    %v330 = vadd.f32 %v329, %v84
    %v331 = vadd.f32 %v330, %v100
    %v332 = vadd.f32 %v331, %v116
    %v333 = vadd.f32 %v332, %v132
    %v334 = vadd.f32 %v333, %v148
    %v335 = vrot.slane %v334, 4
    %v336 = vadd.f32 %v334, %v335
    %v337 = vrot.slane %v336, 2
    %v338 = vadd.f32 %v336, %v337
    %v339 = vrot.slane %v338, 1
    %v340 = vadd.f32 %v338, %v339
    %v341 = vadd.f32 %v37, %v53
    %v342 = vadd.f32 %v341, %v69
    %v343 = vadd.f32 %v342, %v85
    %v344 = vadd.f32 %v343, %v101
    %v345 = vadd.f32 %v344, %v117
    %v346 = vadd.f32 %v345, %v133
    %v347 = vadd.f32 %v346, %v149
    %v348 = vrot.slane %v347, 4
    %v349 = vadd.f32 %v347, %v348
    %v350 = vrot.slane %v349, 2
    %v351 = vadd.f32 %v349, %v350
    %v352 = vrot.slane %v351, 1
    %v353 = vadd.f32 %v351, %v352
    %v354 = vadd.f32 %v38, %v54
    %v355 = vadd.f32 %v354, %v70
    %v356 = vadd.f32 %v355, %v86
    %v357 = vadd.f32 %v356, %v102
    %v358 = vadd.f32 %v357, %v118
    %v359 = vadd.f32 %v358, %v134
    %v360 = vadd.f32 %v359, %v150
    %v361 = vrot.slane %v360, 4
    %v362 = vadd.f32 %v360, %v361
    %v363 = vrot.slane %v362, 2
    %v364 = vadd.f32 %v362, %v363
    %v365 = vrot.slane %v364, 1
    %v366 = vadd.f32 %v364, %v365
    %v367 = vadd.f32 %v39, %v55
    %v368 = vadd.f32 %v367, %v71
    %v369 = vadd.f32 %v368, %v87
    %v370 = vadd.f32 %v369, %v103
    %v371 = vadd.f32 %v370, %v119
    %v372 = vadd.f32 %v371, %v135
    %v373 = vadd.f32 %v372, %v151
    %v374 = vrot.slane %v373, 4
    %v375 = vadd.f32 %v373, %v374
    %v376 = vrot.slane %v375, 2
    %v377 = vadd.f32 %v375, %v376
    %v378 = vrot.slane %v377, 1
    %v379 = vadd.f32 %v377, %v378
    %v380 = vadd.f32 %v40, %v56
    %v381 = vadd.f32 %v380, %v72
    %v382 = vadd.f32 %v381, %v88
    %v383 = vadd.f32 %v382, %v104
    %v384 = vadd.f32 %v383, %v120
    %v385 = vadd.f32 %v384, %v136
    %v386 = vadd.f32 %v385, %v152
    %v387 = vrot.slane %v386, 4
    %v388 = vadd.f32 %v386, %v387
    %v389 = vrot.slane %v388, 2
    %v390 = vadd.f32 %v388, %v389
    %v391 = vrot.slane %v390, 1
    %v392 = vadd.f32 %v390, %v391
    %v393 = vadd.f32 %v41, %v57
    %v394 = vadd.f32 %v393, %v73
    %v395 = vadd.f32 %v394, %v89
    %v396 = vadd.f32 %v395, %v105
    %v397 = vadd.f32 %v396, %v121
    %v398 = vadd.f32 %v397, %v137
    %v399 = vadd.f32 %v398, %v153
    %v400 = vrot.slane %v399, 4
    %v401 = vadd.f32 %v399, %v400
    %v402 = vrot.slane %v401, 2
    %v403 = vadd.f32 %v401, %v402
    %v404 = vrot.slane %v403, 1
    %v405 = vadd.f32 %v403, %v404
    %v406 = vadd.f32 %v42, %v58
    %v407 = vadd.f32 %v406, %v74
    %v408 = vadd.f32 %v407, %v90
    %v409 = vadd.f32 %v408, %v106
    %v410 = vadd.f32 %v409, %v122
    %v411 = vadd.f32 %v410, %v138
    %v412 = vadd.f32 %v411, %v154
    %v413 = vrot.slane %v412, 4
    %v414 = vadd.f32 %v412, %v413
    %v415 = vrot.slane %v414, 2
    %v416 = vadd.f32 %v414, %v415
    %v417 = vrot.slane %v416, 1
    %v418 = vadd.f32 %v416, %v417
    %v419 = vadd.f32 %v43, %v59
    %v420 = vadd.f32 %v419, %v75
    %v421 = vadd.f32 %v420, %v91
    %v422 = vadd.f32 %v421, %v107
    %v423 = vadd.f32 %v422, %v123
    %v424 = vadd.f32 %v423, %v139
    %v425 = vadd.f32 %v424, %v155
    %v426 = vrot.slane %v425, 4
    %v427 = vadd.f32 %v425, %v426
    %v428 = vrot.slane %v427, 2
    %v429 = vadd.f32 %v427, %v428
    %v430 = vrot.slane %v429, 1
    %v431 = vadd.f32 %v429, %v430
    %v432 = vadd.f32 %v44, %v60
    %v433 = vadd.f32 %v432, %v76
    %v434 = vadd.f32 %v433, %v92
    %v435 = vadd.f32 %v434, %v108
    %v436 = vadd.f32 %v435, %v124
    %v437 = vadd.f32 %v436, %v140
    %v438 = vadd.f32 %v437, %v156
    %v439 = vrot.slane %v438, 4
    %v440 = vadd.f32 %v438, %v439
    %v441 = vrot.slane %v440, 2
    %v442 = vadd.f32 %v440, %v441
    %v443 = vrot.slane %v442, 1
    %v444 = vadd.f32 %v442, %v443
    %v445 = vadd.f32 %v45, %v61
    %v446 = vadd.f32 %v445, %v77
    %v447 = vadd.f32 %v446, %v93
    %v448 = vadd.f32 %v447, %v109
    %v449 = vadd.f32 %v448, %v125
    %v450 = vadd.f32 %v449, %v141
    %v451 = vadd.f32 %v450, %v157
    %v452 = vrot.slane %v451, 4
    %v453 = vadd.f32 %v451, %v452
    %v454 = vrot.slane %v453, 2
    %v455 = vadd.f32 %v453, %v454
    %v456 = vrot.slane %v455, 1
    %v457 = vadd.f32 %v455, %v456
    %v458 = vadd.f32 %v46, %v62
    %v459 = vadd.f32 %v458, %v78
    %v460 = vadd.f32 %v459, %v94
    %v461 = vadd.f32 %v460, %v110
    %v462 = vadd.f32 %v461, %v126
    %v463 = vadd.f32 %v462, %v142
    %v464 = vadd.f32 %v463, %v158
    %v465 = vrot.slane %v464, 4
    %v466 = vadd.f32 %v464, %v465
    %v467 = vrot.slane %v466, 2
    %v468 = vadd.f32 %v466, %v467
    %v469 = vrot.slane %v468, 1
    %v470 = vadd.f32 %v468, %v469
    %v471 = vadd.f32 %v47, %v63
    %v472 = vadd.f32 %v471, %v79
    %v473 = vadd.f32 %v472, %v95
    %v474 = vadd.f32 %v473, %v111
    %v475 = vadd.f32 %v474, %v127
    %v476 = vadd.f32 %v475, %v143
    %v477 = vadd.f32 %v476, %v159
    %v478 = vrot.slane %v477, 4
    %v479 = vadd.f32 %v477, %v478
    %v480 = vrot.slane %v479, 2
    %v481 = vadd.f32 %v479, %v480
    %v482 = vrot.slane %v481, 1
    %v483 = vadd.f32 %v481, %v482
    %v484 = vadd.f32 %v48, %v64
    %v485 = vadd.f32 %v484, %v80
    %v486 = vadd.f32 %v485, %v96
    %v487 = vadd.f32 %v486, %v112
    %v488 = vadd.f32 %v487, %v128
    %v489 = vadd.f32 %v488, %v144
    %v490 = vadd.f32 %v489, %v160
    %v491 = vrot.slane %v490, 4
    %v492 = vadd.f32 %v490, %v491
    %v493 = vrot.slane %v492, 2
    %v494 = vadd.f32 %v492, %v493
    %v495 = vrot.slane %v494, 1
    %v496 = vadd.f32 %v494, %v495
    %v497 = vadd.f32 %v161, %v177
    %v498 = vadd.f32 %v497, %v193
    %v499 = vadd.f32 %v498, %v209
    %v500 = vadd.f32 %v499, %v225
    %v501 = vadd.f32 %v500, %v241
    %v502 = vadd.f32 %v501, %v257
    %v503 = vadd.f32 %v502, %v273
    %v504 = vrot.slane %v503, 4
    %v505 = vadd.f32 %v503, %v504
    %v506 = vrot.slane %v505, 2
    %v507 = vadd.f32 %v505, %v506
    %v508 = vrot.slane %v507, 1
    %v509 = vadd.f32 %v507, %v508
    %v510 = vadd.f32 %v162, %v178
    %v511 = vadd.f32 %v510, %v194
    %v512 = vadd.f32 %v511, %v210
    %v513 = vadd.f32 %v512, %v226
    %v514 = vadd.f32 %v513, %v242
    %v515 = vadd.f32 %v514, %v258
    %v516 = vadd.f32 %v515, %v274
    %v517 = vrot.slane %v516, 4
    %v518 = vadd.f32 %v516, %v517
    %v519 = vrot.slane %v518, 2
    %v520 = vadd.f32 %v518, %v519
    %v521 = vrot.slane %v520, 1
    %v522 = vadd.f32 %v520, %v521
    %v523 = vadd.f32 %v163, %v179
    %v524 = vadd.f32 %v523, %v195
    %v525 = vadd.f32 %v524, %v211
    %v526 = vadd.f32 %v525, %v227
    %v527 = vadd.f32 %v526, %v243
    %v528 = vadd.f32 %v527, %v259
    %v529 = vadd.f32 %v528, %v275
    %v530 = vrot.slane %v529, 4
    %v531 = vadd.f32 %v529, %v530
    %v532 = vrot.slane %v531, 2
    %v533 = vadd.f32 %v531, %v532
    %v534 = vrot.slane %v533, 1
    %v535 = vadd.f32 %v533, %v534
    %v536 = vadd.f32 %v164, %v180
    %v537 = vadd.f32 %v536, %v196
    %v538 = vadd.f32 %v537, %v212
    %v539 = vadd.f32 %v538, %v228
    %v540 = vadd.f32 %v539, %v244
    %v541 = vadd.f32 %v540, %v260
    %v542 = vadd.f32 %v541, %v276
    %v543 = vrot.slane %v542, 4
    %v544 = vadd.f32 %v542, %v543
    %v545 = vrot.slane %v544, 2
    %v546 = vadd.f32 %v544, %v545
    %v547 = vrot.slane %v546, 1
    %v548 = vadd.f32 %v546, %v547
    %v549 = vadd.f32 %v165, %v181
    %v550 = vadd.f32 %v549, %v197
    %v551 = vadd.f32 %v550, %v213
    %v552 = vadd.f32 %v551, %v229
    %v553 = vadd.f32 %v552, %v245
    %v554 = vadd.f32 %v553, %v261
    %v555 = vadd.f32 %v554, %v277
    %v556 = vrot.slane %v555, 4
    %v557 = vadd.f32 %v555, %v556
    %v558 = vrot.slane %v557, 2
    %v559 = vadd.f32 %v557, %v558
    %v560 = vrot.slane %v559, 1
    %v561 = vadd.f32 %v559, %v560
    %v562 = vadd.f32 %v166, %v182
    %v563 = vadd.f32 %v562, %v198
    %v564 = vadd.f32 %v563, %v214
    %v565 = vadd.f32 %v564, %v230
    %v566 = vadd.f32 %v565, %v246
    %v567 = vadd.f32 %v566, %v262
    %v568 = vadd.f32 %v567, %v278
    %v569 = vrot.slane %v568, 4
    %v570 = vadd.f32 %v568, %v569
    %v571 = vrot.slane %v570, 2
    %v572 = vadd.f32 %v570, %v571
    %v573 = vrot.slane %v572, 1
    %v574 = vadd.f32 %v572, %v573
    %v575 = vadd.f32 %v167, %v183
    %v576 = vadd.f32 %v575, %v199
    %v577 = vadd.f32 %v576, %v215
    %v578 = vadd.f32 %v577, %v231
    %v579 = vadd.f32 %v578, %v247
    %v580 = vadd.f32 %v579, %v263
    %v581 = vadd.f32 %v580, %v279
    %v582 = vrot.slane %v581, 4
    %v583 = vadd.f32 %v581, %v582
    %v584 = vrot.slane %v583, 2
    %v585 = vadd.f32 %v583, %v584
    %v586 = vrot.slane %v585, 1
    %v587 = vadd.f32 %v585, %v586
    %v588 = vadd.f32 %v168, %v184
    %v589 = vadd.f32 %v588, %v200
    %v590 = vadd.f32 %v589, %v216
    %v591 = vadd.f32 %v590, %v232
    %v592 = vadd.f32 %v591, %v248
    %v593 = vadd.f32 %v592, %v264
    %v594 = vadd.f32 %v593, %v280
    %v595 = vrot.slane %v594, 4
    %v596 = vadd.f32 %v594, %v595
    %v597 = vrot.slane %v596, 2
    %v598 = vadd.f32 %v596, %v597
    %v599 = vrot.slane %v598, 1
    %v600 = vadd.f32 %v598, %v599
    %v601 = vadd.f32 %v169, %v185
    %v602 = vadd.f32 %v601, %v201
    %v603 = vadd.f32 %v602, %v217
    %v604 = vadd.f32 %v603, %v233
    %v605 = vadd.f32 %v604, %v249
    %v606 = vadd.f32 %v605, %v265
    %v607 = vadd.f32 %v606, %v281
    %v608 = vrot.slane %v607, 4
    %v609 = vadd.f32 %v607, %v608
    %v610 = vrot.slane %v609, 2
    %v611 = vadd.f32 %v609, %v610
    %v612 = vrot.slane %v611, 1
    %v613 = vadd.f32 %v611, %v612
    %v614 = vadd.f32 %v170, %v186
    %v615 = vadd.f32 %v614, %v202
    %v616 = vadd.f32 %v615, %v218
    %v617 = vadd.f32 %v616, %v234
    %v618 = vadd.f32 %v617, %v250
    %v619 = vadd.f32 %v618, %v266
    %v620 = vadd.f32 %v619, %v282
    %v621 = vrot.slane %v620, 4
    %v622 = vadd.f32 %v620, %v621
    %v623 = vrot.slane %v622, 2
    %v624 = vadd.f32 %v622, %v623
    %v625 = vrot.slane %v624, 1
    %v626 = vadd.f32 %v624, %v625
    %v627 = vadd.f32 %v171, %v187
    %v628 = vadd.f32 %v627, %v203
    %v629 = vadd.f32 %v628, %v219
    %v630 = vadd.f32 %v629, %v235
    %v631 = vadd.f32 %v630, %v251
    %v632 = vadd.f32 %v631, %v267
    %v633 = vadd.f32 %v632, %v283
    %v634 = vrot.slane %v633, 4
    %v635 = vadd.f32 %v633, %v634
    %v636 = vrot.slane %v635, 2
    %v637 = vadd.f32 %v635, %v636
    %v638 = vrot.slane %v637, 1
    %v639 = vadd.f32 %v637, %v638
    %v640 = vadd.f32 %v172, %v188
    %v641 = vadd.f32 %v640, %v204
    %v642 = vadd.f32 %v641, %v220
    %v643 = vadd.f32 %v642, %v236
    %v644 = vadd.f32 %v643, %v252
    %v645 = vadd.f32 %v644, %v268
    %v646 = vadd.f32 %v645, %v284
    %v647 = vrot.slane %v646, 4
    %v648 = vadd.f32 %v646, %v647
    %v649 = vrot.slane %v648, 2
    %v650 = vadd.f32 %v648, %v649
    %v651 = vrot.slane %v650, 1
    %v652 = vadd.f32 %v650, %v651
    %v653 = vadd.f32 %v173, %v189
    %v654 = vadd.f32 %v653, %v205
    %v655 = vadd.f32 %v654, %v221
    %v656 = vadd.f32 %v655, %v237
    %v657 = vadd.f32 %v656, %v253
    %v658 = vadd.f32 %v657, %v269
    %v659 = vadd.f32 %v658, %v285
    %v660 = vrot.slane %v659, 4
    %v661 = vadd.f32 %v659, %v660
    %v662 = vrot.slane %v661, 2
    %v663 = vadd.f32 %v661, %v662
    %v664 = vrot.slane %v663, 1
    %v665 = vadd.f32 %v663, %v664
    %v666 = vadd.f32 %v174, %v190
    %v667 = vadd.f32 %v666, %v206
    %v668 = vadd.f32 %v667, %v222
    %v669 = vadd.f32 %v668, %v238
    %v670 = vadd.f32 %v669, %v254
    %v671 = vadd.f32 %v670, %v270
    %v672 = vadd.f32 %v671, %v286
    %v673 = vrot.slane %v672, 4
    %v674 = vadd.f32 %v672, %v673
    %v675 = vrot.slane %v674, 2
    %v676 = vadd.f32 %v674, %v675
    %v677 = vrot.slane %v676, 1
    %v678 = vadd.f32 %v676, %v677
    %v679 = vadd.f32 %v175, %v191
    %v680 = vadd.f32 %v679, %v207
    %v681 = vadd.f32 %v680, %v223
    %v682 = vadd.f32 %v681, %v239
    %v683 = vadd.f32 %v682, %v255
    %v684 = vadd.f32 %v683, %v271
    %v685 = vadd.f32 %v684, %v287
    %v686 = vrot.slane %v685, 4
    %v687 = vadd.f32 %v685, %v686
    %v688 = vrot.slane %v687, 2
    %v689 = vadd.f32 %v687, %v688
    %v690 = vrot.slane %v689, 1
    %v691 = vadd.f32 %v689, %v690
    %v692 = vadd.f32 %v176, %v192
    %v693 = vadd.f32 %v692, %v208
    %v694 = vadd.f32 %v693, %v224
    %v695 = vadd.f32 %v694, %v240
    %v696 = vadd.f32 %v695, %v256
    %v697 = vadd.f32 %v696, %v272
    %v698 = vadd.f32 %v697, %v288
    %v699 = vrot.slane %v698, 4
    %v700 = vadd.f32 %v698, %v699
    %v701 = vrot.slane %v700, 2
    %v702 = vadd.f32 %v700, %v701
    %v703 = vrot.slane %v702, 1
    %v704 = vadd.f32 %v702, %v703
    %v705 = vmul.f32 %v301, 0.015625
    %v706 = vmul.f32 %v314, 0.015625
    %v707 = vmul.f32 %v327, 0.015625
    %v708 = vmul.f32 %v340, 0.015625
    %v709 = vmul.f32 %v353, 0.015625
    %v710 = vmul.f32 %v366, 0.015625
    %v711 = vmul.f32 %v379, 0.015625
    %v712 = vmul.f32 %v392, 0.015625
    %v713 = vmul.f32 %v405, 0.015625
    %v714 = vmul.f32 %v418, 0.015625
    %v715 = vmul.f32 %v431, 0.015625
    %v716 = vmul.f32 %v444, 0.015625
    %v717 = vmul.f32 %v457, 0.015625
    %v718 = vmul.f32 %v470, 0.015625
    %v719 = vmul.f32 %v483, 0.015625
    %v720 = vmul.f32 %v496, 0.015625
    %v721 = vmul.f32 %v509, 0.015625
    %v722 = vmul.f32 %v522, 0.015625
    %v723 = vmul.f32 %v535, 0.015625
    %v724 = vmul.f32 %v548, 0.015625
    %v725 = vmul.f32 %v561, 0.015625
    %v726 = vmul.f32 %v574, 0.015625
    %v727 = vmul.f32 %v587, 0.015625
    %v728 = vmul.f32 %v600, 0.015625
    %v729 = vmul.f32 %v613, 0.015625
    %v730 = vmul.f32 %v626, 0.015625
    %v731 = vmul.f32 %v639, 0.015625
    %v732 = vmul.f32 %v652, 0.015625
    %v733 = vmul.f32 %v665, 0.015625
    %v734 = vmul.f32 %v678, 0.015625
    %v735 = vmul.f32 %v691, 0.015625
    %v736 = vmul.f32 %v704, 0.015625
    %v737 = vld [vmem:[%s1] sm:$0xff]
    %v738 = vld [vmem:[%s1 + $0x8] sm:$0xff]
    %v741 = vperm.slane %v737, 0
    %v742 = vperm.slane %v737, 1
    %v743 = vperm.slane %v737, 2
    %v744 = vperm.slane %v737, 3
    %v745 = vperm.slane %v737, 4
    %v746 = vperm.slane %v737, 5
    %v747 = vperm.slane %v737, 6
    %v748 = vperm.slane %v737, 7
    %v749 = vperm.slane %v738, 0
    %v750 = vperm.slane %v738, 1
    %v751 = vperm.slane %v738, 2
    %v752 = vperm.slane %v738, 3
    %v753 = vperm.slane %v738, 4
    %v754 = vperm.slane %v738, 5
    %v755 = vperm.slane %v738, 6
    %v756 = vperm.slane %v738, 7
    %v773 = vmul.f32 %v705, %v741
    %v774 = vmul.f32 %v706, %v742
    %v775 = vmul.f32 %v707, %v743
    %v776 = vmul.f32 %v708, %v744
    %v777 = vmul.f32 %v709, %v745
    %v778 = vmul.f32 %v710, %v746
    %v779 = vmul.f32 %v711, %v747
    %v780 = vmul.f32 %v712, %v748
    %v781 = vmul.f32 %v713, %v749
    %v782 = vmul.f32 %v714, %v750
    %v783 = vmul.f32 %v715, %v751
    %v784 = vmul.f32 %v716, %v752
    %v785 = vmul.f32 %v717, %v753
    %v786 = vmul.f32 %v718, %v754
    %v787 = vmul.f32 %v719, %v755
    %v788 = vmul.f32 %v720, %v756
    %v789 = vmul.f32 %v721, %v741
    %v790 = vmul.f32 %v722, %v742
    %v791 = vmul.f32 %v723, %v743
    %v792 = vmul.f32 %v724, %v744
    %v793 = vmul.f32 %v725, %v745
    %v794 = vmul.f32 %v726, %v746
    %v795 = vmul.f32 %v727, %v747
    %v796 = vmul.f32 %v728, %v748
    %v797 = vmul.f32 %v729, %v749
    %v798 = vmul.f32 %v730, %v750
    %v799 = vmul.f32 %v731, %v751
    %v800 = vmul.f32 %v732, %v752
    %v801 = vmul.f32 %v733, %v753
    %v802 = vmul.f32 %v734, %v754
    %v803 = vmul.f32 %v735, %v755
    %v804 = vmul.f32 %v736, %v756
    %v805 = vld [vmem:[%s2] sm:$0xff]
    %v806 = vld [vmem:[%s2 + $0x8] sm:$0xff]
    %v809 = vperm.slane %v805, 0
    %v810 = vperm.slane %v805, 1
    %v811 = vperm.slane %v805, 2
    %v812 = vperm.slane %v805, 3
    %v813 = vperm.slane %v805, 4
    %v814 = vperm.slane %v805, 5
    %v815 = vperm.slane %v805, 6
    %v816 = vperm.slane %v805, 7
    %v817 = vperm.slane %v806, 0
    %v818 = vperm.slane %v806, 1
    %v819 = vperm.slane %v806, 2
    %v820 = vperm.slane %v806, 3
    %v821 = vperm.slane %v806, 4
    %v822 = vperm.slane %v806, 5
    %v823 = vperm.slane %v806, 6
    %v824 = vperm.slane %v806, 7
    %v841 = vadd.f32 %v773, %v809
    %v842 = vadd.f32 %v774, %v810
    %v843 = vadd.f32 %v775, %v811
    %v844 = vadd.f32 %v776, %v812
    %v845 = vadd.f32 %v777, %v813
    %v846 = vadd.f32 %v778, %v814
    %v847 = vadd.f32 %v779, %v815
    %v848 = vadd.f32 %v780, %v816
    %v849 = vadd.f32 %v781, %v817
    %v850 = vadd.f32 %v782, %v818
    %v851 = vadd.f32 %v783, %v819
    %v852 = vadd.f32 %v784, %v820
    %v853 = vadd.f32 %v785, %v821
    %v854 = vadd.f32 %v786, %v822
    %v855 = vadd.f32 %v787, %v823
    %v856 = vadd.f32 %v788, %v824
    %v857 = vadd.f32 %v789, %v809
    %v858 = vadd.f32 %v790, %v810
    %v859 = vadd.f32 %v791, %v811
    %v860 = vadd.f32 %v792, %v812
    %v861 = vadd.f32 %v793, %v813
    %v862 = vadd.f32 %v794, %v814
    %v863 = vadd.f32 %v795, %v815
    %v864 = vadd.f32 %v796, %v816
    %v865 = vadd.f32 %v797, %v817
    %v866 = vadd.f32 %v798, %v818
    %v867 = vadd.f32 %v799, %v819
    %v868 = vadd.f32 %v800, %v820
    %v869 = vadd.f32 %v801, %v821
    %v870 = vadd.f32 %v802, %v822
    %v871 = vadd.f32 %v803, %v823
    %v872 = vadd.f32 %v804, %v824
    %v905 = vrot.slane %v706, 6
    %v906 = vrot.slane %v707, 4
    %v907 = vrot.slane %v708, 2
    %v908 = vrot.slane %v710, 6
    %v909 = vrot.slane %v711, 4
    %v910 = vrot.slane %v712, 2
    %v911 = vrot.slane %v714, 6
    %v912 = vrot.slane %v715, 4
    %v913 = vrot.slane %v716, 2
    %v914 = vrot.slane %v718, 6
    %v915 = vrot.slane %v719, 4
    %v916 = vrot.slane %v720, 2
    %v917 = vrot.slane %v722, 6
    %v918 = vrot.slane %v723, 4
    %v919 = vrot.slane %v724, 2
    %v920 = vrot.slane %v726, 6
    %v921 = vrot.slane %v727, 4
    %v922 = vrot.slane %v728, 2
    %v923 = vrot.slane %v730, 6
    %v924 = vrot.slane %v731, 4
    %v925 = vrot.slane %v732, 2
    %v926 = vrot.slane %v734, 6
    %v927 = vrot.slane %v735, 4
    %v928 = vrot.slane %v736, 2
    %vm929 = vcmask 1041408
    %v930 = vsel %vm929, %v705, %v905
    %vm931 = vcmask 1045508
    %v932 = vsel %vm931, %v906, %v907
    %vm933 = vcmask 1043456
    %v934 = vsel %vm933, %v930, %v932
    %v935 = vsel %vm929, %v709, %v908
    %v936 = vsel %vm931, %v909, %v910
    %v937 = vsel %vm933, %v935, %v936
    %v938 = vsel %vm929, %v713, %v911
    %v939 = vsel %vm931, %v912, %v913
    %v940 = vsel %vm933, %v938, %v939
    %v941 = vsel %vm929, %v717, %v914
    %v942 = vsel %vm931, %v915, %v916
    %v943 = vsel %vm933, %v941, %v942
    %v944 = vsel %vm929, %v721, %v917
    %v945 = vsel %vm931, %v918, %v919
    %v946 = vsel %vm933, %v944, %v945
    %v947 = vsel %vm929, %v725, %v920
    %v948 = vsel %vm931, %v921, %v922
    %v949 = vsel %vm933, %v947, %v948
    %v950 = vsel %vm929, %v729, %v923
    %v951 = vsel %vm931, %v924, %v925
    %v952 = vsel %vm933, %v950, %v951
    %v953 = vsel %vm929, %v733, %v926
    %v954 = vsel %vm931, %v927, %v928
    %v955 = vsel %vm933, %v953, %v954
    %vm956 = vcmask 1044484
    %v957 = vsel %vm956, %v934, %v934
    %vm958 = vcmask 1046534
    %v959 = vsel %vm958, %v934, %v957
    %v960 = vrot.slane %v946, 7
    %vm961 = vcmask 1041409
    %v962 = vsel %vm961, %v960, %v959
    %vm963 = vcmask 1043459
    %v964 = vsel %vm963, %v960, %v962
    %vm965 = vcmask 1045509
    %v966 = vsel %vm965, %v960, %v964
    %vm967 = vcmask 1047559
    %v968 = vsel %vm967, %v960, %v966
    %v969 = vsel %vm956, %v937, %v937
    %v970 = vsel %vm958, %v937, %v969
    %v971 = vrot.slane %v949, 7
    %v972 = vsel %vm961, %v971, %v970
    %v973 = vsel %vm963, %v971, %v972
    %v974 = vsel %vm965, %v971, %v973
    %v975 = vsel %vm967, %v971, %v974
    %v976 = vsel %vm956, %v940, %v940
    %v977 = vsel %vm958, %v940, %v976
    %v978 = vrot.slane %v952, 7
    %v979 = vsel %vm961, %v978, %v977
    %v980 = vsel %vm963, %v978, %v979
    %v981 = vsel %vm965, %v978, %v980
    %v982 = vsel %vm967, %v978, %v981
    %v983 = vsel %vm956, %v943, %v943
    %v984 = vsel %vm958, %v943, %v983
    %v985 = vrot.slane %v955, 7
    %v986 = vsel %vm961, %v985, %v984
    %v987 = vsel %vm963, %v985, %v986
    %v988 = vsel %vm965, %v985, %v987
    %v989 = vsel %vm967, %v985, %v988
    %994 = vst [vmem:[#allocation5] sm:$0xff] %v968
    %995 = vst [vmem:[#allocation5 + $0x8] sm:$0xff] %v975
    %996 = vst [vmem:[#allocation5 + $0x10] sm:$0xff] %v982
    %997 = vst [vmem:[#allocation5 + $0x18] sm:$0xff] %v989
    %v1030 = vrot.slane %v842, 6
    %v1031 = vrot.slane %v843, 4
    %v1032 = vrot.slane %v844, 2
    %v1033 = vrot.slane %v846, 6
    %v1034 = vrot.slane %v847, 4
    %v1035 = vrot.slane %v848, 2
    %v1036 = vrot.slane %v850, 6
    %v1037 = vrot.slane %v851, 4
    %v1038 = vrot.slane %v852, 2
    %v1039 = vrot.slane %v854, 6
    %v1040 = vrot.slane %v855, 4
    %v1041 = vrot.slane %v856, 2
    %v1042 = vrot.slane %v858, 6
    %v1043 = vrot.slane %v859, 4
    %v1044 = vrot.slane %v860, 2
    %v1045 = vrot.slane %v862, 6
    %v1046 = vrot.slane %v863, 4
    %v1047 = vrot.slane %v864, 2
    %v1048 = vrot.slane %v866, 6
    %v1049 = vrot.slane %v867, 4
    %v1050 = vrot.slane %v868, 2
    %v1051 = vrot.slane %v870, 6
    %v1052 = vrot.slane %v871, 4
    %v1053 = vrot.slane %v872, 2
    %v1054 = vsel %vm929, %v841, %v1030
    %v1055 = vsel %vm931, %v1031, %v1032
    %v1056 = vsel %vm933, %v1054, %v1055
    %v1057 = vsel %vm929, %v845, %v1033
    %v1058 = vsel %vm931, %v1034, %v1035
    %v1059 = vsel %vm933, %v1057, %v1058
    %v1060 = vsel %vm929, %v849, %v1036
    %v1061 = vsel %vm931, %v1037, %v1038
    %v1062 = vsel %vm933, %v1060, %v1061
    %v1063 = vsel %vm929, %v853, %v1039
    %v1064 = vsel %vm931, %v1040, %v1041
    %v1065 = vsel %vm933, %v1063, %v1064
    %v1066 = vsel %vm929, %v857, %v1042
    %v1067 = vsel %vm931, %v1043, %v1044
    %v1068 = vsel %vm933, %v1066, %v1067
    %v1069 = vsel %vm929, %v861, %v1045
    %v1070 = vsel %vm931, %v1046, %v1047
    %v1071 = vsel %vm933, %v1069, %v1070
    %v1072 = vsel %vm929, %v865, %v1048
    %v1073 = vsel %vm931, %v1049, %v1050
    %v1074 = vsel %vm933, %v1072, %v1073
    %v1075 = vsel %vm929, %v869, %v1051
    %v1076 = vsel %vm931, %v1052, %v1053
    %v1077 = vsel %vm933, %v1075, %v1076
    %v1078 = vsel %vm956, %v1056, %v1056
    %v1079 = vsel %vm958, %v1056, %v1078
    %v1080 = vrot.slane %v1068, 7
    %v1081 = vsel %vm961, %v1080, %v1079
    %v1082 = vsel %vm963, %v1080, %v1081
    %v1083 = vsel %vm965, %v1080, %v1082
    %v1084 = vsel %vm967, %v1080, %v1083
    %v1085 = vsel %vm956, %v1059, %v1059
    %v1086 = vsel %vm958, %v1059, %v1085
    %v1087 = vrot.slane %v1071, 7
    %v1088 = vsel %vm961, %v1087, %v1086
    %v1089 = vsel %vm963, %v1087, %v1088
    %v1090 = vsel %vm965, %v1087, %v1089
    %v1091 = vsel %vm967, %v1087, %v1090
    %v1092 = vsel %vm956, %v1062, %v1062
    %v1093 = vsel %vm958, %v1062, %v1092
    %v1094 = vrot.slane %v1074, 7
    %v1095 = vsel %vm961, %v1094, %v1093
    %v1096 = vsel %vm963, %v1094, %v1095
    %v1097 = vsel %vm965, %v1094, %v1096
    %v1098 = vsel %vm967, %v1094, %v1097
    %v1099 = vsel %vm956, %v1065, %v1065
    %v1100 = vsel %vm958, %v1065, %v1099
    %v1101 = vrot.slane %v1077, 7
    %v1102 = vsel %vm961, %v1101, %v1100
    %v1103 = vsel %vm963, %v1101, %v1102
    %v1104 = vsel %vm965, %v1101, %v1103
    %v1105 = vsel %vm967, %v1101, %v1104
    %1110 = vst [vmem:[%s4] sm:$0xff] %v1084
    %1111 = vst [vmem:[%s4 + $0x8] sm:$0xff] %v1091
    %1112 = vst [vmem:[%s4 + $0x10] sm:$0xff] %v1098
    %1113 = vst [vmem:[%s4 + $0x18] sm:$0xff] %v1105
    // Predicated region
    $region18: #{baseline_head_forward.2} parent=1 // pred_check
      _
    $region19: #{baseline_head_forward.2} parent=1 // pred_check_branch
      %1115 = sbr.rel (0) target = $region21
    $region20: #{baseline_head_forward.2} parent=1 // pred_region
      %1117 = vsyncadd [#allocation4], 0
      %s1119 = sshll.u32 [#allocation5], 4
      %s1120 = int_to_ptr.vmem [resolvable:$true] %s1119
      %s1121 = sshll.u32 %s3, 4
      %s1122 = int_to_ptr.hbm [resolvable:$true] %s1121
      %1124 = dma.vmem_to_hbm [thread:$0]  %s1120, 512, %s1122, [#allocation4]
    $region21: #{baseline_head_forward.2} parent=1 // pred_fallthru
      _
    // Predicated region
    $region22: #{baseline_head_forward.2} parent=1 // pred_check
      _
    $region23: #{baseline_head_forward.2} parent=1 // pred_check_branch
      %1126 = sbr.rel (0) target = $region25
    $region24: #{baseline_head_forward.2} parent=1 // pred_region
      _
    $region25: #{baseline_head_forward.2} parent=1 // pred_fallthru
      _
    // Predicated region
    $region26: #{baseline_head_forward.2} parent=1 // pred_check
      _
    $region27: #{baseline_head_forward.2} parent=1 // pred_check_branch
      %1128 = sbr.rel (0) target = $region29
    $region28: #{baseline_head_forward.2} parent=1 // pred_region
      %1130 = dma.done [#allocation4], 512
    $region29: #{baseline_head_forward.2} parent=1 // pred_fallthru
      _
    // Predicated region
    $region30: #{baseline_head_forward.2} parent=1 // pred_check
      _
    $region31: #{baseline_head_forward.2} parent=1 // pred_check_branch
      %1132 = sbr.rel (0) target = $region33
    $region32: #{baseline_head_forward.2} parent=1 // pred_region
      _
    $region33: #{baseline_head_forward.2} parent=1 // pred_fallthru
      _
    %1133 = vsyncpa [#allocation3], 1
    %1134 = vsyncpa [#allocation4], 1

// kernel: baseline_head_forward.3
$region0: #{baseline_head_forward.3}
  #allocation0 [shape = 'u32[]', space=smem, size = 0x4, offset = 0x4, fixed_abs, tag = 'smem constant byte address 0x4 - core index']
  #allocation1 [shape = 'u32[72,128]{1,0:T(1,128)}', space=vmem, size = 0x9000, scoped, tag = 'internal scratch']
  %s0 = inlined_call_operand.vmem [shape: f32[2,2048], index: 0, kind: input, shape index: {}]
  %s1 = inlined_call_operand.vmem [shape: bf16[2048,128], index: 1, kind: input, shape index: {}]
  %s2 = inlined_call_operand.hbm [shape: f32[2,128], index: 2, kind: output, shape index: {}]
  %s3 = sld [smem:[#allocation0]]
  $region18: #{baseline_head_forward.3} parent=0
    _
  %s5 = ssub.s32 1, %s3
  %s6 = scalar_select 0, %s5, %s3
  $region1: #{baseline_head_forward.3} parent=0
    #allocation2 [shape = 'u8[1024]{0}', space=vmem, size = 0x400, scoped, tag = 'output window, operand 0, single buffered']
    #allocation3 [shape = 's32[1]{0}', space=sflag, size = 0x4, scoped, tag = 'scoped memory for baseline_head_forward.3']
    %7 = vsyncpa [#allocation3], 0
    // Predicated region
    $region2: #{baseline_head_forward.3} parent=1 // pred_check
      _
    $region3: #{baseline_head_forward.3} parent=1 // pred_check_branch
      %9 = sbr.rel (0) target = $region5
    $region4: #{baseline_head_forward.3} parent=1 // pred_region
      _
    $region5: #{baseline_head_forward.3} parent=1 // pred_fallthru
      _
    // Predicated region
    $region6: #{baseline_head_forward.3} parent=1 // pred_check
      _
    $region7: #{baseline_head_forward.3} parent=1 // pred_check_branch
      %11 = sbr.rel (0) target = $region9
    $region8: #{baseline_head_forward.3} parent=1 // pred_region
      _
    $region9: #{baseline_head_forward.3} parent=1 // pred_fallthru
      _
    %v12 = vld [vmem:[%s0] sm:$0xff]
    %v13 = vld [vmem:[%s0 + $0x8] sm:$0xff]
    %v14 = vld [vmem:[%s0 + $0x10] sm:$0xff]
    %v15 = vld [vmem:[%s0 + $0x18] sm:$0xff]
    %20 = vst [vmem:[#allocation1] ss:$4 sm:$0xff] %v12
    %s21 = scalar_lea.vmem [#allocation1], 32
    %22 = vst [vmem:[%s21] ss:$4 sm:$0xff] %v13
    %v23 = vld.sshfl [vmem:[#allocation1] sm:$0xff pattern:$0x73625140]
    %v24 = vld.sshfl [vmem:[#allocation1 + $0x8] sm:$0xff pattern:$0x73625140]
    %v25 = vld.sshfl [vmem:[#allocation1 + $0x10] sm:$0xff pattern:$0x73625140]
    %v26 = vld.sshfl [vmem:[#allocation1 + $0x18] sm:$0xff pattern:$0x73625140]
    %v27 = vld.sshfl [vmem:[#allocation1 + $0x20] sm:$0xff pattern:$0x73625140]
    %v28 = vld.sshfl [vmem:[#allocation1 + $0x28] sm:$0xff pattern:$0x73625140]
    %v29 = vld.sshfl [vmem:[#allocation1 + $0x30] sm:$0xff pattern:$0x73625140]
    %v30 = vld.sshfl [vmem:[#allocation1 + $0x38] sm:$0xff pattern:$0x73625140]
    %31 = vst [vmem:[#allocation1] ss:$4 sm:$0xff] %v14
    %32 = vst [vmem:[%s21] ss:$4 sm:$0xff] %v15
    %v33 = vld.sshfl [vmem:[#allocation1] sm:$0xff pattern:$0x73625140]
    %v34 = vld.sshfl [vmem:[#allocation1 + $0x8] sm:$0xff pattern:$0x73625140]
    %v35 = vld.sshfl [vmem:[#allocation1 + $0x10] sm:$0xff pattern:$0x73625140]
    %v36 = vld.sshfl [vmem:[#allocation1 + $0x18] sm:$0xff pattern:$0x73625140]
    %v37 = vld.sshfl [vmem:[#allocation1 + $0x20] sm:$0xff pattern:$0x73625140]
    %v38 = vld.sshfl [vmem:[#allocation1 + $0x28] sm:$0xff pattern:$0x73625140]
    %v39 = vld.sshfl [vmem:[#allocation1 + $0x30] sm:$0xff pattern:$0x73625140]
    %v40 = vld.sshfl [vmem:[#allocation1 + $0x38] sm:$0xff pattern:$0x73625140]
    %v57 = vpack.c.bf16 %v23, %v23
    %v58 = vpack.c.bf16 %v24, %v24
    %v59 = vpack.c.bf16 %v25, %v25
    %v60 = vpack.c.bf16 %v26, %v26
    %v61 = vpack.c.bf16 %v27, %v27
    %v62 = vpack.c.bf16 %v28, %v28
    %v63 = vpack.c.bf16 %v29, %v29
    %v64 = vpack.c.bf16 %v30, %v30
    %v65 = vpack.c.bf16 %v33, %v33
    %v66 = vpack.c.bf16 %v34, %v34
    %v67 = vpack.c.bf16 %v35, %v35
    %v68 = vpack.c.bf16 %v36, %v36
    %v69 = vpack.c.bf16 %v37, %v37
    %v70 = vpack.c.bf16 %v38, %v38
    %v71 = vpack.c.bf16 %v39, %v39
    %v72 = vpack.c.bf16 %v40, %v40
    %v73 = vld [vmem:[%s1] sm:$0xf]
    %v74 = vld [vmem:[%s1 + $0x4] sm:$0xf]
    %v75 = vld [vmem:[%s1 + $0x8] sm:$0xf]
    %v76 = vld [vmem:[%s1 + $0xc] sm:$0xf]
    %v77 = vld [vmem:[%s1 + $0x10] sm:$0xf]
    %v78 = vld [vmem:[%s1 + $0x14] sm:$0xf]
    %v79 = vld [vmem:[%s1 + $0x18] sm:$0xf]
    %v80 = vld [vmem:[%s1 + $0x1c] sm:$0xf]
    %v81 = vld [vmem:[%s1 + $0x20] sm:$0xf]
    %v82 = vld [vmem:[%s1 + $0x24] sm:$0xf]
    %v83 = vld [vmem:[%s1 + $0x28] sm:$0xf]
    %v84 = vld [vmem:[%s1 + $0x2c] sm:$0xf]
    %v85 = vld [vmem:[%s1 + $0x30] sm:$0xf]
    %v86 = vld [vmem:[%s1 + $0x34] sm:$0xf]
    %v87 = vld [vmem:[%s1 + $0x38] sm:$0xf]
    %v88 = vld [vmem:[%s1 + $0x3c] sm:$0xf]
    %v89 = vld [vmem:[%s1 + $0x40] sm:$0xf]
    %v90 = vld [vmem:[%s1 + $0x44] sm:$0xf]
    %v91 = vld [vmem:[%s1 + $0x48] sm:$0xf]
    %v92 = vld [vmem:[%s1 + $0x4c] sm:$0xf]
    %v93 = vld [vmem:[%s1 + $0x50] sm:$0xf]
    %v94 = vld [vmem:[%s1 + $0x54] sm:$0xf]
    %v95 = vld [vmem:[%s1 + $0x58] sm:$0xf]
    %v96 = vld [vmem:[%s1 + $0x5c] sm:$0xf]
    %v97 = vld [vmem:[%s1 + $0x60] sm:$0xf]
    %v98 = vld [vmem:[%s1 + $0x64] sm:$0xf]
    %v99 = vld [vmem:[%s1 + $0x68] sm:$0xf]
    %v100 = vld [vmem:[%s1 + $0x6c] sm:$0xf]
    %v101 = vld [vmem:[%s1 + $0x70] sm:$0xf]
    %v102 = vld [vmem:[%s1 + $0x74] sm:$0xf]
    %v103 = vld [vmem:[%s1 + $0x78] sm:$0xf]
    %v104 = vld [vmem:[%s1 + $0x7c] sm:$0xf]
    %v105 = vld [vmem:[%s1 + $0x80] sm:$0xf]
    %v106 = vld [vmem:[%s1 + $0x84] sm:$0xf]
    %v107 = vld [vmem:[%s1 + $0x88] sm:$0xf]
    %v108 = vld [vmem:[%s1 + $0x8c] sm:$0xf]
    %v109 = vld [vmem:[%s1 + $0x90] sm:$0xf]
    %v110 = vld [vmem:[%s1 + $0x94] sm:$0xf]
    %v111 = vld [vmem:[%s1 + $0x98] sm:$0xf]
    %v112 = vld [vmem:[%s1 + $0x9c] sm:$0xf]
    %v113 = vld [vmem:[%s1 + $0xa0] sm:$0xf]
    %v114 = vld [vmem:[%s1 + $0xa4] sm:$0xf]
    %v115 = vld [vmem:[%s1 + $0xa8] sm:$0xf]
    %v116 = vld [vmem:[%s1 + $0xac] sm:$0xf]
    %v117 = vld [vmem:[%s1 + $0xb0] sm:$0xf]
    %v118 = vld [vmem:[%s1 + $0xb4] sm:$0xf]
    %v119 = vld [vmem:[%s1 + $0xb8] sm:$0xf]
    %v120 = vld [vmem:[%s1 + $0xbc] sm:$0xf]
    %v121 = vld [vmem:[%s1 + $0xc0] sm:$0xf]
    %v122 = vld [vmem:[%s1 + $0xc4] sm:$0xf]
    %v123 = vld [vmem:[%s1 + $0xc8] sm:$0xf]
    %v124 = vld [vmem:[%s1 + $0xcc] sm:$0xf]
    %v125 = vld [vmem:[%s1 + $0xd0] sm:$0xf]
    %v126 = vld [vmem:[%s1 + $0xd4] sm:$0xf]
    %v127 = vld [vmem:[%s1 + $0xd8] sm:$0xf]
    %v128 = vld [vmem:[%s1 + $0xdc] sm:$0xf]
    %v129 = vld [vmem:[%s1 + $0xe0] sm:$0xf]
    %v130 = vld [vmem:[%s1 + $0xe4] sm:$0xf]
    %v131 = vld [vmem:[%s1 + $0xe8] sm:$0xf]
    %v132 = vld [vmem:[%s1 + $0xec] sm:$0xf]
    %v133 = vld [vmem:[%s1 + $0xf0] sm:$0xf]
    %v134 = vld [vmem:[%s1 + $0xf4] sm:$0xf]
    %v135 = vld [vmem:[%s1 + $0xf8] sm:$0xf]
    %v136 = vld [vmem:[%s1 + $0xfc] sm:$0xf]
    %v137 = vld [vmem:[%s1 + $0x100] sm:$0xf]
    %v138 = vld [vmem:[%s1 + $0x104] sm:$0xf]
    %v139 = vld [vmem:[%s1 + $0x108] sm:$0xf]
    %v140 = vld [vmem:[%s1 + $0x10c] sm:$0xf]
    %v141 = vld [vmem:[%s1 + $0x110] sm:$0xf]
    %v142 = vld [vmem:[%s1 + $0x114] sm:$0xf]
    %v143 = vld [vmem:[%s1 + $0x118] sm:$0xf]
    %v144 = vld [vmem:[%s1 + $0x11c] sm:$0xf]
    %v145 = vld [vmem:[%s1 + $0x120] sm:$0xf]
    %v146 = vld [vmem:[%s1 + $0x124] sm:$0xf]
    %v147 = vld [vmem:[%s1 + $0x128] sm:$0xf]
    %v148 = vld [vmem:[%s1 + $0x12c] sm:$0xf]
    %v149 = vld [vmem:[%s1 + $0x130] sm:$0xf]
    %v150 = vld [vmem:[%s1 + $0x134] sm:$0xf]
    %v151 = vld [vmem:[%s1 + $0x138] sm:$0xf]
    %v152 = vld [vmem:[%s1 + $0x13c] sm:$0xf]
    %v153 = vld [vmem:[%s1 + $0x140] sm:$0xf]
    %v154 = vld [vmem:[%s1 + $0x144] sm:$0xf]
    %v155 = vld [vmem:[%s1 + $0x148] sm:$0xf]
    %v156 = vld [vmem:[%s1 + $0x14c] sm:$0xf]
    %v157 = vld [vmem:[%s1 + $0x150] sm:$0xf]
    %v158 = vld [vmem:[%s1 + $0x154] sm:$0xf]
    %v159 = vld [vmem:[%s1 + $0x158] sm:$0xf]
    %v160 = vld [vmem:[%s1 + $0x15c] sm:$0xf]
    %v161 = vld [vmem:[%s1 + $0x160] sm:$0xf]
    %v162 = vld [vmem:[%s1 + $0x164] sm:$0xf]
    %v163 = vld [vmem:[%s1 + $0x168] sm:$0xf]
    %v164 = vld [vmem:[%s1 + $0x16c] sm:$0xf]
    %v165 = vld [vmem:[%s1 + $0x170] sm:$0xf]
    %v166 = vld [vmem:[%s1 + $0x174] sm:$0xf]
    %v167 = vld [vmem:[%s1 + $0x178] sm:$0xf]
    %v168 = vld [vmem:[%s1 + $0x17c] sm:$0xf]
    %v169 = vld [vmem:[%s1 + $0x180] sm:$0xf]
    %v170 = vld [vmem:[%s1 + $0x184] sm:$0xf]
    %v171 = vld [vmem:[%s1 + $0x188] sm:$0xf]
    %v172 = vld [vmem:[%s1 + $0x18c] sm:$0xf]
    %v173 = vld [vmem:[%s1 + $0x190] sm:$0xf]
    %v174 = vld [vmem:[%s1 + $0x194] sm:$0xf]
    %v175 = vld [vmem:[%s1 + $0x198] sm:$0xf]
    %v176 = vld [vmem:[%s1 + $0x19c] sm:$0xf]
    %v177 = vld [vmem:[%s1 + $0x1a0] sm:$0xf]
    %v178 = vld [vmem:[%s1 + $0x1a4] sm:$0xf]
    %v179 = vld [vmem:[%s1 + $0x1a8] sm:$0xf]
    %v180 = vld [vmem:[%s1 + $0x1ac] sm:$0xf]
    %v181 = vld [vmem:[%s1 + $0x1b0] sm:$0xf]
    %v182 = vld [vmem:[%s1 + $0x1b4] sm:$0xf]
    %v183 = vld [vmem:[%s1 + $0x1b8] sm:$0xf]
    %v184 = vld [vmem:[%s1 + $0x1bc] sm:$0xf]
    %v185 = vld [vmem:[%s1 + $0x1c0] sm:$0xf]
    %v186 = vld [vmem:[%s1 + $0x1c4] sm:$0xf]
    %v187 = vld [vmem:[%s1 + $0x1c8] sm:$0xf]
    %v188 = vld [vmem:[%s1 + $0x1cc] sm:$0xf]
    %v189 = vld [vmem:[%s1 + $0x1d0] sm:$0xf]
    %v190 = vld [vmem:[%s1 + $0x1d4] sm:$0xf]
    %v191 = vld [vmem:[%s1 + $0x1d8] sm:$0xf]
    %v192 = vld [vmem:[%s1 + $0x1dc] sm:$0xf]
    %v193 = vld [vmem:[%s1 + $0x1e0] sm:$0xf]
    %v194 = vld [vmem:[%s1 + $0x1e4] sm:$0xf]
    %v195 = vld [vmem:[%s1 + $0x1e8] sm:$0xf]
    %v196 = vld [vmem:[%s1 + $0x1ec] sm:$0xf]
    %v197 = vld [vmem:[%s1 + $0x1f0] sm:$0xf]
    %v198 = vld [vmem:[%s1 + $0x1f4] sm:$0xf]
    %v199 = vld [vmem:[%s1 + $0x1f8] sm:$0xf]
    %v200 = vld [vmem:[%s1 + $0x1fc] sm:$0xf]
    %v201 = vld [vmem:[%s1 + $0x200] sm:$0xf]
    %v202 = vld [vmem:[%s1 + $0x204] sm:$0xf]
    %v203 = vld [vmem:[%s1 + $0x208] sm:$0xf]
    %v204 = vld [vmem:[%s1 + $0x20c] sm:$0xf]
    %v205 = vld [vmem:[%s1 + $0x210] sm:$0xf]
    %v206 = vld [vmem:[%s1 + $0x214] sm:$0xf]
    %v207 = vld [vmem:[%s1 + $0x218] sm:$0xf]
    %v208 = vld [vmem:[%s1 + $0x21c] sm:$0xf]
    %v209 = vld [vmem:[%s1 + $0x220] sm:$0xf]
    %v210 = vld [vmem:[%s1 + $0x224] sm:$0xf]
    %v211 = vld [vmem:[%s1 + $0x228] sm:$0xf]
    %v212 = vld [vmem:[%s1 + $0x22c] sm:$0xf]
    %v213 = vld [vmem:[%s1 + $0x230] sm:$0xf]
    %v214 = vld [vmem:[%s1 + $0x234] sm:$0xf]
    %v215 = vld [vmem:[%s1 + $0x238] sm:$0xf]
    %v216 = vld [vmem:[%s1 + $0x23c] sm:$0xf]
    %v217 = vld [vmem:[%s1 + $0x240] sm:$0xf]
    %v218 = vld [vmem:[%s1 + $0x244] sm:$0xf]
    %v219 = vld [vmem:[%s1 + $0x248] sm:$0xf]
    %v220 = vld [vmem:[%s1 + $0x24c] sm:$0xf]
    %v221 = vld [vmem:[%s1 + $0x250] sm:$0xf]
    %v222 = vld [vmem:[%s1 + $0x254] sm:$0xf]
    %v223 = vld [vmem:[%s1 + $0x258] sm:$0xf]
    %v224 = vld [vmem:[%s1 + $0x25c] sm:$0xf]
    %v225 = vld [vmem:[%s1 + $0x260] sm:$0xf]
    %v226 = vld [vmem:[%s1 + $0x264] sm:$0xf]
    %v227 = vld [vmem:[%s1 + $0x268] sm:$0xf]
    %v228 = vld [vmem:[%s1 + $0x26c] sm:$0xf]
    %v229 = vld [vmem:[%s1 + $0x270] sm:$0xf]
    %v230 = vld [vmem:[%s1 + $0x274] sm:$0xf]
    %v231 = vld [vmem:[%s1 + $0x278] sm:$0xf]
    %v232 = vld [vmem:[%s1 + $0x27c] sm:$0xf]
    %v233 = vld [vmem:[%s1 + $0x280] sm:$0xf]
    %v234 = vld [vmem:[%s1 + $0x284] sm:$0xf]
    %v235 = vld [vmem:[%s1 + $0x288] sm:$0xf]
    %v236 = vld [vmem:[%s1 + $0x28c] sm:$0xf]
    %v237 = vld [vmem:[%s1 + $0x290] sm:$0xf]
    %v238 = vld [vmem:[%s1 + $0x294] sm:$0xf]
    %v239 = vld [vmem:[%s1 + $0x298] sm:$0xf]
    %v240 = vld [vmem:[%s1 + $0x29c] sm:$0xf]
    %v241 = vld [vmem:[%s1 + $0x2a0] sm:$0xf]
    %v242 = vld [vmem:[%s1 + $0x2a4] sm:$0xf]
    %v243 = vld [vmem:[%s1 + $0x2a8] sm:$0xf]
    %v244 = vld [vmem:[%s1 + $0x2ac] sm:$0xf]
    %v245 = vld [vmem:[%s1 + $0x2b0] sm:$0xf]
    %v246 = vld [vmem:[%s1 + $0x2b4] sm:$0xf]
    %v247 = vld [vmem:[%s1 + $0x2b8] sm:$0xf]
    %v248 = vld [vmem:[%s1 + $0x2bc] sm:$0xf]
    %v249 = vld [vmem:[%s1 + $0x2c0] sm:$0xf]
    %v250 = vld [vmem:[%s1 + $0x2c4] sm:$0xf]
    %v251 = vld [vmem:[%s1 + $0x2c8] sm:$0xf]
    %v252 = vld [vmem:[%s1 + $0x2cc] sm:$0xf]
    %v253 = vld [vmem:[%s1 + $0x2d0] sm:$0xf]
    %v254 = vld [vmem:[%s1 + $0x2d4] sm:$0xf]
    %v255 = vld [vmem:[%s1 + $0x2d8] sm:$0xf]
    %v256 = vld [vmem:[%s1 + $0x2dc] sm:$0xf]
    %v257 = vld [vmem:[%s1 + $0x2e0] sm:$0xf]
    %v258 = vld [vmem:[%s1 + $0x2e4] sm:$0xf]
    %v259 = vld [vmem:[%s1 + $0x2e8] sm:$0xf]
    %v260 = vld [vmem:[%s1 + $0x2ec] sm:$0xf]
    %v261 = vld [vmem:[%s1 + $0x2f0] sm:$0xf]
    %v262 = vld [vmem:[%s1 + $0x2f4] sm:$0xf]
    %v263 = vld [vmem:[%s1 + $0x2f8] sm:$0xf]
    %v264 = vld [vmem:[%s1 + $0x2fc] sm:$0xf]
    %v265 = vld [vmem:[%s1 + $0x300] sm:$0xf]
    %v266 = vld [vmem:[%s1 + $0x304] sm:$0xf]
    %v267 = vld [vmem:[%s1 + $0x308] sm:$0xf]
    %v268 = vld [vmem:[%s1 + $0x30c] sm:$0xf]
    %v269 = vld [vmem:[%s1 + $0x310] sm:$0xf]
    %v270 = vld [vmem:[%s1 + $0x314] sm:$0xf]
    %v271 = vld [vmem:[%s1 + $0x318] sm:$0xf]
    %v272 = vld [vmem:[%s1 + $0x31c] sm:$0xf]
    %v273 = vld [vmem:[%s1 + $0x320] sm:$0xf]
    %v274 = vld [vmem:[%s1 + $0x324] sm:$0xf]
    %v275 = vld [vmem:[%s1 + $0x328] sm:$0xf]
    %v276 = vld [vmem:[%s1 + $0x32c] sm:$0xf]
    %v277 = vld [vmem:[%s1 + $0x330] sm:$0xf]
    %v278 = vld [vmem:[%s1 + $0x334] sm:$0xf]
    %v279 = vld [vmem:[%s1 + $0x338] sm:$0xf]
    %v280 = vld [vmem:[%s1 + $0x33c] sm:$0xf]
    %v281 = vld [vmem:[%s1 + $0x340] sm:$0xf]
    %v282 = vld [vmem:[%s1 + $0x344] sm:$0xf]
    %v283 = vld [vmem:[%s1 + $0x348] sm:$0xf]
    %v284 = vld [vmem:[%s1 + $0x34c] sm:$0xf]
    %v285 = vld [vmem:[%s1 + $0x350] sm:$0xf]
    %v286 = vld [vmem:[%s1 + $0x354] sm:$0xf]
    %v287 = vld [vmem:[%s1 + $0x358] sm:$0xf]
    %v288 = vld [vmem:[%s1 + $0x35c] sm:$0xf]
    %v289 = vld [vmem:[%s1 + $0x360] sm:$0xf]
    %v290 = vld [vmem:[%s1 + $0x364] sm:$0xf]
    %v291 = vld [vmem:[%s1 + $0x368] sm:$0xf]
    %v292 = vld [vmem:[%s1 + $0x36c] sm:$0xf]
    %v293 = vld [vmem:[%s1 + $0x370] sm:$0xf]
    %v294 = vld [vmem:[%s1 + $0x374] sm:$0xf]
    %v295 = vld [vmem:[%s1 + $0x378] sm:$0xf]
    %v296 = vld [vmem:[%s1 + $0x37c] sm:$0xf]
    %v297 = vld [vmem:[%s1 + $0x380] sm:$0xf]
    %v298 = vld [vmem:[%s1 + $0x384] sm:$0xf]
    %v299 = vld [vmem:[%s1 + $0x388] sm:$0xf]
    %v300 = vld [vmem:[%s1 + $0x38c] sm:$0xf]
    %v301 = vld [vmem:[%s1 + $0x390] sm:$0xf]
    %v302 = vld [vmem:[%s1 + $0x394] sm:$0xf]
    %v303 = vld [vmem:[%s1 + $0x398] sm:$0xf]
    %v304 = vld [vmem:[%s1 + $0x39c] sm:$0xf]
    %v305 = vld [vmem:[%s1 + $0x3a0] sm:$0xf]
    %v306 = vld [vmem:[%s1 + $0x3a4] sm:$0xf]
    %v307 = vld [vmem:[%s1 + $0x3a8] sm:$0xf]
    %v308 = vld [vmem:[%s1 + $0x3ac] sm:$0xf]
    %v309 = vld [vmem:[%s1 + $0x3b0] sm:$0xf]
    %v310 = vld [vmem:[%s1 + $0x3b4] sm:$0xf]
    %v311 = vld [vmem:[%s1 + $0x3b8] sm:$0xf]
    %v312 = vld [vmem:[%s1 + $0x3bc] sm:$0xf]
    %v313 = vld [vmem:[%s1 + $0x3c0] sm:$0xf]
    %v314 = vld [vmem:[%s1 + $0x3c4] sm:$0xf]
    %v315 = vld [vmem:[%s1 + $0x3c8] sm:$0xf]
    %v316 = vld [vmem:[%s1 + $0x3cc] sm:$0xf]
    %v317 = vld [vmem:[%s1 + $0x3d0] sm:$0xf]
    %v318 = vld [vmem:[%s1 + $0x3d4] sm:$0xf]
    %v319 = vld [vmem:[%s1 + $0x3d8] sm:$0xf]
    %v320 = vld [vmem:[%s1 + $0x3dc] sm:$0xf]
    %v321 = vld [vmem:[%s1 + $0x3e0] sm:$0xf]
    %v322 = vld [vmem:[%s1 + $0x3e4] sm:$0xf]
    %v323 = vld [vmem:[%s1 + $0x3e8] sm:$0xf]
    %v324 = vld [vmem:[%s1 + $0x3ec] sm:$0xf]
    %v325 = vld [vmem:[%s1 + $0x3f0] sm:$0xf]
    %v326 = vld [vmem:[%s1 + $0x3f4] sm:$0xf]
    %v327 = vld [vmem:[%s1 + $0x3f8] sm:$0xf]
    %v328 = vld [vmem:[%s1 + $0x3fc] sm:$0xf]
    %v585 = vunpack.c.l.b16 %v73
    %v586 = vunpack.c.l.b16 %v74
    %v587 = vunpack.c.l.b16 %v75
    %v588 = vunpack.c.l.b16 %v76
    %v589 = vunpack.c.l.b16 %v77
    %v590 = vunpack.c.l.b16 %v78
    %v591 = vunpack.c.l.b16 %v79
    %v592 = vunpack.c.l.b16 %v80
    %v593 = vunpack.c.l.b16 %v81
    %v594 = vunpack.c.l.b16 %v82
    %v595 = vunpack.c.l.b16 %v83
    %v596 = vunpack.c.l.b16 %v84
    %v597 = vunpack.c.l.b16 %v85
    %v598 = vunpack.c.l.b16 %v86
    %v599 = vunpack.c.l.b16 %v87
    %v600 = vunpack.c.l.b16 %v88
    %v601 = vunpack.c.l.b16 %v89
    %v602 = vunpack.c.l.b16 %v90
    %v603 = vunpack.c.l.b16 %v91
    %v604 = vunpack.c.l.b16 %v92
    %v605 = vunpack.c.l.b16 %v93
    %v606 = vunpack.c.l.b16 %v94
    %v607 = vunpack.c.l.b16 %v95
    %v608 = vunpack.c.l.b16 %v96
    %v609 = vunpack.c.l.b16 %v97
    %v610 = vunpack.c.l.b16 %v98
    %v611 = vunpack.c.l.b16 %v99
    %v612 = vunpack.c.l.b16 %v100
    %v613 = vunpack.c.l.b16 %v101
    %v614 = vunpack.c.l.b16 %v102
    %v615 = vunpack.c.l.b16 %v103
    %v616 = vunpack.c.l.b16 %v104
    %v617 = vunpack.c.l.b16 %v105
    %v618 = vunpack.c.l.b16 %v106
    %v619 = vunpack.c.l.b16 %v107
    %v620 = vunpack.c.l.b16 %v108
    %v621 = vunpack.c.l.b16 %v109
    %v622 = vunpack.c.l.b16 %v110
    %v623 = vunpack.c.l.b16 %v111
    %v624 = vunpack.c.l.b16 %v112
    %v625 = vunpack.c.l.b16 %v113
    %v626 = vunpack.c.l.b16 %v114
    %v627 = vunpack.c.l.b16 %v115
    %v628 = vunpack.c.l.b16 %v116
    %v629 = vunpack.c.l.b16 %v117
    %v630 = vunpack.c.l.b16 %v118
    %v631 = vunpack.c.l.b16 %v119
    %v632 = vunpack.c.l.b16 %v120
    %v633 = vunpack.c.l.b16 %v121
    %v634 = vunpack.c.l.b16 %v122
    %v635 = vunpack.c.l.b16 %v123
    %v636 = vunpack.c.l.b16 %v124
    %v637 = vunpack.c.l.b16 %v125
    %v638 = vunpack.c.l.b16 %v126
    %v639 = vunpack.c.l.b16 %v127
    %v640 = vunpack.c.l.b16 %v128
    %v641 = vunpack.c.l.b16 %v129
    %v642 = vunpack.c.l.b16 %v130
    %v643 = vunpack.c.l.b16 %v131
    %v644 = vunpack.c.l.b16 %v132
    %v645 = vunpack.c.l.b16 %v133
    %v646 = vunpack.c.l.b16 %v134
    %v647 = vunpack.c.l.b16 %v135
    %v648 = vunpack.c.l.b16 %v136
    %v649 = vunpack.c.l.b16 %v137
    %v650 = vunpack.c.l.b16 %v138
    %v651 = vunpack.c.l.b16 %v139
    %v652 = vunpack.c.l.b16 %v140
    %v653 = vunpack.c.l.b16 %v141
    %v654 = vunpack.c.l.b16 %v142
    %v655 = vunpack.c.l.b16 %v143
    %v656 = vunpack.c.l.b16 %v144
    %v657 = vunpack.c.l.b16 %v145
    %v658 = vunpack.c.l.b16 %v146
    %v659 = vunpack.c.l.b16 %v147
    %v660 = vunpack.c.l.b16 %v148
    %v661 = vunpack.c.l.b16 %v149
    %v662 = vunpack.c.l.b16 %v150
    %v663 = vunpack.c.l.b16 %v151
    %v664 = vunpack.c.l.b16 %v152
    %v665 = vunpack.c.l.b16 %v153
    %v666 = vunpack.c.l.b16 %v154
    %v667 = vunpack.c.l.b16 %v155
    %v668 = vunpack.c.l.b16 %v156
    %v669 = vunpack.c.l.b16 %v157
    %v670 = vunpack.c.l.b16 %v158
    %v671 = vunpack.c.l.b16 %v159
    %v672 = vunpack.c.l.b16 %v160
    %v673 = vunpack.c.l.b16 %v161
    %v674 = vunpack.c.l.b16 %v162
    %v675 = vunpack.c.l.b16 %v163
    %v676 = vunpack.c.l.b16 %v164
    %v677 = vunpack.c.l.b16 %v165
    %v678 = vunpack.c.l.b16 %v166
    %v679 = vunpack.c.l.b16 %v167
    %v680 = vunpack.c.l.b16 %v168
    %v681 = vunpack.c.l.b16 %v169
    %v682 = vunpack.c.l.b16 %v170
    %v683 = vunpack.c.l.b16 %v171
    %v684 = vunpack.c.l.b16 %v172
    %v685 = vunpack.c.l.b16 %v173
    %v686 = vunpack.c.l.b16 %v174
    %v687 = vunpack.c.l.b16 %v175
    %v688 = vunpack.c.l.b16 %v176
    %v689 = vunpack.c.l.b16 %v177
    %v690 = vunpack.c.l.b16 %v178
    %v691 = vunpack.c.l.b16 %v179
    %v692 = vunpack.c.l.b16 %v180
    %v693 = vunpack.c.l.b16 %v181
    %v694 = vunpack.c.l.b16 %v182
    %v695 = vunpack.c.l.b16 %v183
    %v696 = vunpack.c.l.b16 %v184
    %v697 = vunpack.c.l.b16 %v185
    %v698 = vunpack.c.l.b16 %v186
    %v699 = vunpack.c.l.b16 %v187
    %v700 = vunpack.c.l.b16 %v188
    %v701 = vunpack.c.l.b16 %v189
    %v702 = vunpack.c.l.b16 %v190
    %v703 = vunpack.c.l.b16 %v191
    %v704 = vunpack.c.l.b16 %v192
    %v705 = vunpack.c.l.b16 %v193
    %v706 = vunpack.c.l.b16 %v194
    %v707 = vunpack.c.l.b16 %v195
    %v708 = vunpack.c.l.b16 %v196
    %v709 = vunpack.c.l.b16 %v197
    %v710 = vunpack.c.l.b16 %v198
    %v711 = vunpack.c.l.b16 %v199
    %v712 = vunpack.c.l.b16 %v200
    %v713 = vunpack.c.l.b16 %v201
    %v714 = vunpack.c.l.b16 %v202
    %v715 = vunpack.c.l.b16 %v203
    %v716 = vunpack.c.l.b16 %v204
    %v717 = vunpack.c.l.b16 %v205
    %v718 = vunpack.c.l.b16 %v206
    %v719 = vunpack.c.l.b16 %v207
    %v720 = vunpack.c.l.b16 %v208
    %v721 = vunpack.c.l.b16 %v209
    %v722 = vunpack.c.l.b16 %v210
    %v723 = vunpack.c.l.b16 %v211
    %v724 = vunpack.c.l.b16 %v212
    %v725 = vunpack.c.l.b16 %v213
    %v726 = vunpack.c.l.b16 %v214
    %v727 = vunpack.c.l.b16 %v215
    %v728 = vunpack.c.l.b16 %v216
    %v729 = vunpack.c.l.b16 %v217
    %v730 = vunpack.c.l.b16 %v218
    %v731 = vunpack.c.l.b16 %v219
    %v732 = vunpack.c.l.b16 %v220
    %v733 = vunpack.c.l.b16 %v221
    %v734 = vunpack.c.l.b16 %v222
    %v735 = vunpack.c.l.b16 %v223
    %v736 = vunpack.c.l.b16 %v224
    %v737 = vunpack.c.l.b16 %v225
    %v738 = vunpack.c.l.b16 %v226
    %v739 = vunpack.c.l.b16 %v227
    %v740 = vunpack.c.l.b16 %v228
    %v741 = vunpack.c.l.b16 %v229
    %v742 = vunpack.c.l.b16 %v230
    %v743 = vunpack.c.l.b16 %v231
    %v744 = vunpack.c.l.b16 %v232
    %v745 = vunpack.c.l.b16 %v233
    %v746 = vunpack.c.l.b16 %v234
    %v747 = vunpack.c.l.b16 %v235
    %v748 = vunpack.c.l.b16 %v236
    %v749 = vunpack.c.l.b16 %v237
    %v750 = vunpack.c.l.b16 %v238
    %v751 = vunpack.c.l.b16 %v239
    %v752 = vunpack.c.l.b16 %v240
    %v753 = vunpack.c.l.b16 %v241
    %v754 = vunpack.c.l.b16 %v242
    %v755 = vunpack.c.l.b16 %v243
    %v756 = vunpack.c.l.b16 %v244
    %v757 = vunpack.c.l.b16 %v245
    %v758 = vunpack.c.l.b16 %v246
    %v759 = vunpack.c.l.b16 %v247
    %v760 = vunpack.c.l.b16 %v248
    %v761 = vunpack.c.l.b16 %v249
    %v762 = vunpack.c.l.b16 %v250
    %v763 = vunpack.c.l.b16 %v251
    %v764 = vunpack.c.l.b16 %v252
    %v765 = vunpack.c.l.b16 %v253
    %v766 = vunpack.c.l.b16 %v254
    %v767 = vunpack.c.l.b16 %v255
    %v768 = vunpack.c.l.b16 %v256
    %v769 = vunpack.c.l.b16 %v257
    %v770 = vunpack.c.l.b16 %v258
    %v771 = vunpack.c.l.b16 %v259
    %v772 = vunpack.c.l.b16 %v260
    %v773 = vunpack.c.l.b16 %v261
    %v774 = vunpack.c.l.b16 %v262
    %v775 = vunpack.c.l.b16 %v263
    %v776 = vunpack.c.l.b16 %v264
    %v777 = vunpack.c.l.b16 %v265
    %v778 = vunpack.c.l.b16 %v266
    %v779 = vunpack.c.l.b16 %v267
    %v780 = vunpack.c.l.b16 %v268
    %v781 = vunpack.c.l.b16 %v269
    %v782 = vunpack.c.l.b16 %v270
    %v783 = vunpack.c.l.b16 %v271
    %v784 = vunpack.c.l.b16 %v272
    %v785 = vunpack.c.l.b16 %v273
    %v786 = vunpack.c.l.b16 %v274
    %v787 = vunpack.c.l.b16 %v275
    %v788 = vunpack.c.l.b16 %v276
    %v789 = vunpack.c.l.b16 %v277
    %v790 = vunpack.c.l.b16 %v278
    %v791 = vunpack.c.l.b16 %v279
    %v792 = vunpack.c.l.b16 %v280
    %v793 = vunpack.c.l.b16 %v281
    %v794 = vunpack.c.l.b16 %v282
    %v795 = vunpack.c.l.b16 %v283
    %v796 = vunpack.c.l.b16 %v284
    %v797 = vunpack.c.l.b16 %v285
    %v798 = vunpack.c.l.b16 %v286
    %v799 = vunpack.c.l.b16 %v287
    %v800 = vunpack.c.l.b16 %v288
    %v801 = vunpack.c.l.b16 %v289
    %v802 = vunpack.c.l.b16 %v290
    %v803 = vunpack.c.l.b16 %v291
    %v804 = vunpack.c.l.b16 %v292
    %v805 = vunpack.c.l.b16 %v293
    %v806 = vunpack.c.l.b16 %v294
    %v807 = vunpack.c.l.b16 %v295
    %v808 = vunpack.c.l.b16 %v296
    %v809 = vunpack.c.l.b16 %v297
    %v810 = vunpack.c.l.b16 %v298
    %v811 = vunpack.c.l.b16 %v299
    %v812 = vunpack.c.l.b16 %v300
    %v813 = vunpack.c.l.b16 %v301
    %v814 = vunpack.c.l.b16 %v302
    %v815 = vunpack.c.l.b16 %v303
    %v816 = vunpack.c.l.b16 %v304
    %v817 = vunpack.c.l.b16 %v305
    %v818 = vunpack.c.l.b16 %v306
    %v819 = vunpack.c.l.b16 %v307
    %v820 = vunpack.c.l.b16 %v308
    %v821 = vunpack.c.l.b16 %v309
    %v822 = vunpack.c.l.b16 %v310
    %v823 = vunpack.c.l.b16 %v311
    %v824 = vunpack.c.l.b16 %v312
    %v825 = vunpack.c.l.b16 %v313
    %v826 = vunpack.c.l.b16 %v314
    %v827 = vunpack.c.l.b16 %v315
    %v828 = vunpack.c.l.b16 %v316
    %v829 = vunpack.c.l.b16 %v317
    %v830 = vunpack.c.l.b16 %v318
    %v831 = vunpack.c.l.b16 %v319
    %v832 = vunpack.c.l.b16 %v320
    %v833 = vunpack.c.l.b16 %v321
    %v834 = vunpack.c.l.b16 %v322
    %v835 = vunpack.c.l.b16 %v323
    %v836 = vunpack.c.l.b16 %v324
    %v837 = vunpack.c.l.b16 %v325
    %v838 = vunpack.c.l.b16 %v326
    %v839 = vunpack.c.l.b16 %v327
    %v840 = vunpack.c.l.b16 %v328
    %v841 = vpack.c.b16 %v586, %v585
    %v842 = vpack.c.b16 %v588, %v587
    %v843 = vpack.c.b16 %v590, %v589
    %v844 = vpack.c.b16 %v592, %v591
    %v845 = vpack.c.b16 %v594, %v593
    %v846 = vpack.c.b16 %v596, %v595
    %v847 = vpack.c.b16 %v598, %v597
    %v848 = vpack.c.b16 %v600, %v599
    %v849 = vpack.c.b16 %v602, %v601
    %v850 = vpack.c.b16 %v604, %v603
    %v851 = vpack.c.b16 %v606, %v605
    %v852 = vpack.c.b16 %v608, %v607
    %v853 = vpack.c.b16 %v610, %v609
    %v854 = vpack.c.b16 %v612, %v611
    %v855 = vpack.c.b16 %v614, %v613
    %v856 = vpack.c.b16 %v616, %v615
    %v857 = vpack.c.b16 %v618, %v617
    %v858 = vpack.c.b16 %v620, %v619
    %v859 = vpack.c.b16 %v622, %v621
    %v860 = vpack.c.b16 %v624, %v623
    %v861 = vpack.c.b16 %v626, %v625
    %v862 = vpack.c.b16 %v628, %v627
    %v863 = vpack.c.b16 %v630, %v629
    %v864 = vpack.c.b16 %v632, %v631
    %v865 = vpack.c.b16 %v634, %v633
    %v866 = vpack.c.b16 %v636, %v635
    %v867 = vpack.c.b16 %v638, %v637
    %v868 = vpack.c.b16 %v640, %v639
    %v869 = vpack.c.b16 %v642, %v641
    %v870 = vpack.c.b16 %v644, %v643
    %v871 = vpack.c.b16 %v646, %v645
    %v872 = vpack.c.b16 %v648, %v647
    %v873 = vpack.c.b16 %v650, %v649
    %v874 = vpack.c.b16 %v652, %v651
    %v875 = vpack.c.b16 %v654, %v653
    %v876 = vpack.c.b16 %v656, %v655
    %v877 = vpack.c.b16 %v658, %v657
    %v878 = vpack.c.b16 %v660, %v659
    %v879 = vpack.c.b16 %v662, %v661
    %v880 = vpack.c.b16 %v664, %v663
    %v881 = vpack.c.b16 %v666, %v665
    %v882 = vpack.c.b16 %v668, %v667
    %v883 = vpack.c.b16 %v670, %v669
    %v884 = vpack.c.b16 %v672, %v671
    %v885 = vpack.c.b16 %v674, %v673
    %v886 = vpack.c.b16 %v676, %v675
    %v887 = vpack.c.b16 %v678, %v677
    %v888 = vpack.c.b16 %v680, %v679
    %v889 = vpack.c.b16 %v682, %v681
    %v890 = vpack.c.b16 %v684, %v683
    %v891 = vpack.c.b16 %v686, %v685
    %v892 = vpack.c.b16 %v688, %v687
    %v893 = vpack.c.b16 %v690, %v689
    %v894 = vpack.c.b16 %v692, %v691
    %v895 = vpack.c.b16 %v694, %v693
    %v896 = vpack.c.b16 %v696, %v695
    %v897 = vpack.c.b16 %v698, %v697
    %v898 = vpack.c.b16 %v700, %v699
    %v899 = vpack.c.b16 %v702, %v701
    %v900 = vpack.c.b16 %v704, %v703
    %v901 = vpack.c.b16 %v706, %v705
    %v902 = vpack.c.b16 %v708, %v707
    %v903 = vpack.c.b16 %v710, %v709
    %v904 = vpack.c.b16 %v712, %v711
    %v905 = vpack.c.b16 %v714, %v713
    %v906 = vpack.c.b16 %v716, %v715
    %v907 = vpack.c.b16 %v718, %v717
    %v908 = vpack.c.b16 %v720, %v719
    %v909 = vpack.c.b16 %v722, %v721
    %v910 = vpack.c.b16 %v724, %v723
    %v911 = vpack.c.b16 %v726, %v725
    %v912 = vpack.c.b16 %v728, %v727
    %v913 = vpack.c.b16 %v730, %v729
    %v914 = vpack.c.b16 %v732, %v731
    %v915 = vpack.c.b16 %v734, %v733
    %v916 = vpack.c.b16 %v736, %v735
    %v917 = vpack.c.b16 %v738, %v737
    %v918 = vpack.c.b16 %v740, %v739
    %v919 = vpack.c.b16 %v742, %v741
    %v920 = vpack.c.b16 %v744, %v743
    %v921 = vpack.c.b16 %v746, %v745
    %v922 = vpack.c.b16 %v748, %v747
    %v923 = vpack.c.b16 %v750, %v749
    %v924 = vpack.c.b16 %v752, %v751
    %v925 = vpack.c.b16 %v754, %v753
    %v926 = vpack.c.b16 %v756, %v755
    %v927 = vpack.c.b16 %v758, %v757
    %v928 = vpack.c.b16 %v760, %v759
    %v929 = vpack.c.b16 %v762, %v761
    %v930 = vpack.c.b16 %v764, %v763
    %v931 = vpack.c.b16 %v766, %v765
    %v932 = vpack.c.b16 %v768, %v767
    %v933 = vpack.c.b16 %v770, %v769
    %v934 = vpack.c.b16 %v772, %v771
    %v935 = vpack.c.b16 %v774, %v773
    %v936 = vpack.c.b16 %v776, %v775
    %v937 = vpack.c.b16 %v778, %v777
    %v938 = vpack.c.b16 %v780, %v779
    %v939 = vpack.c.b16 %v782, %v781
    %v940 = vpack.c.b16 %v784, %v783
    %v941 = vpack.c.b16 %v786, %v785
    %v942 = vpack.c.b16 %v788, %v787
    %v943 = vpack.c.b16 %v790, %v789
    %v944 = vpack.c.b16 %v792, %v791
    %v945 = vpack.c.b16 %v794, %v793
    %v946 = vpack.c.b16 %v796, %v795
    %v947 = vpack.c.b16 %v798, %v797
    %v948 = vpack.c.b16 %v800, %v799
    %v949 = vpack.c.b16 %v802, %v801
    %v950 = vpack.c.b16 %v804, %v803
    %v951 = vpack.c.b16 %v806, %v805
    %v952 = vpack.c.b16 %v808, %v807
    %v953 = vpack.c.b16 %v810, %v809
    %v954 = vpack.c.b16 %v812, %v811
    %v955 = vpack.c.b16 %v814, %v813
    %v956 = vpack.c.b16 %v816, %v815
    %v957 = vpack.c.b16 %v818, %v817
    %v958 = vpack.c.b16 %v820, %v819
    %v959 = vpack.c.b16 %v822, %v821
    %v960 = vpack.c.b16 %v824, %v823
    %v961 = vpack.c.b16 %v826, %v825
    %v962 = vpack.c.b16 %v828, %v827
    %v963 = vpack.c.b16 %v830, %v829
    %v964 = vpack.c.b16 %v832, %v831
    %v965 = vpack.c.b16 %v834, %v833
    %v966 = vpack.c.b16 %v836, %v835
    %v967 = vpack.c.b16 %v838, %v837
    %v968 = vpack.c.b16 %v840, %v839
    %1097 = vmatpush.bf16.msra.mxu0 %v848
    %1098 = vmatpush.bf16.msra.mxu0 %v847
    %1099 = vmatpush.bf16.msra.mxu0 %v846
    %1100 = vmatpush.bf16.msra.mxu0 %v845
    %1101 = vmatpush.bf16.msra.mxu0 %v844
    %1102 = vmatpush.bf16.msra.mxu0 %v843
    %1103 = vmatpush.bf16.msra.mxu0 %v842
    %1104 = vmatpush.bf16.msra.mxu0 %v841
    %1105 = vmatmul.bf16.gmra.mxu0 %v57
    %v1106 = vpop.f32.mrf.mxu0
    %v1107 = vadd.f32 0.0, %v1106
    %v1108 = vpop.f32.mrf.mxu0
    %1109 = vdwg.mxu0
    %1110 = vmatpush.bf16.msra.mxu0 %v856
    %1111 = vmatpush.bf16.msra.mxu0 %v855
    %1112 = vmatpush.bf16.msra.mxu0 %v854
    %1113 = vmatpush.bf16.msra.mxu0 %v853
    %1114 = vmatpush.bf16.msra.mxu0 %v852
    %1115 = vmatpush.bf16.msra.mxu0 %v851
    %1116 = vmatpush.bf16.msra.mxu0 %v850
    %1117 = vmatpush.bf16.msra.mxu0 %v849
    %1118 = vmatmul.bf16.gmra.mxu0 %v58
    %v1119 = vpop.f32.mrf.mxu0
    %v1120 = vadd.f32 %v1107, %v1119
    %v1121 = vpop.f32.mrf.mxu0
    %1122 = vdwg.mxu0
    %1123 = vmatpush.bf16.msra.mxu0 %v864
    %1124 = vmatpush.bf16.msra.mxu0 %v863
    %1125 = vmatpush.bf16.msra.mxu0 %v862
    %1126 = vmatpush.bf16.msra.mxu0 %v861
    %1127 = vmatpush.bf16.msra.mxu0 %v860
    %1128 = vmatpush.bf16.msra.mxu0 %v859
    %1129 = vmatpush.bf16.msra.mxu0 %v858
    %1130 = vmatpush.bf16.msra.mxu0 %v857
    %1131 = vmatmul.bf16.gmra.mxu0 %v59
    %v1132 = vpop.f32.mrf.mxu0
    %v1133 = vadd.f32 %v1120, %v1132
    %v1134 = vpop.f32.mrf.mxu0
    %1135 = vdwg.mxu0
    %1136 = vmatpush.bf16.msra.mxu0 %v872
    %1137 = vmatpush.bf16.msra.mxu0 %v871
    %1138 = vmatpush.bf16.msra.mxu0 %v870
    %1139 = vmatpush.bf16.msra.mxu0 %v869
    %1140 = vmatpush.bf16.msra.mxu0 %v868
    %1141 = vmatpush.bf16.msra.mxu0 %v867
    %1142 = vmatpush.bf16.msra.mxu0 %v866
    %1143 = vmatpush.bf16.msra.mxu0 %v865
    %1144 = vmatmul.bf16.gmra.mxu0 %v60
    %v1145 = vpop.f32.mrf.mxu0
    %v1146 = vadd.f32 %v1133, %v1145
    %v1147 = vpop.f32.mrf.mxu0
    %1148 = vdwg.mxu0
    %1149 = vmatpush.bf16.msra.mxu0 %v880
    %1150 = vmatpush.bf16.msra.mxu0 %v879
    %1151 = vmatpush.bf16.msra.mxu0 %v878
    %1152 = vmatpush.bf16.msra.mxu0 %v877
    %1153 = vmatpush.bf16.msra.mxu0 %v876
    %1154 = vmatpush.bf16.msra.mxu0 %v875
    %1155 = vmatpush.bf16.msra.mxu0 %v874
    %1156 = vmatpush.bf16.msra.mxu0 %v873
    %1157 = vmatmul.bf16.gmra.mxu0 %v61
    %v1158 = vpop.f32.mrf.mxu0
    %v1159 = vadd.f32 %v1146, %v1158
    %v1160 = vpop.f32.mrf.mxu0
    %1161 = vdwg.mxu0
    %1162 = vmatpush.bf16.msra.mxu0 %v888
    %1163 = vmatpush.bf16.msra.mxu0 %v887
    %1164 = vmatpush.bf16.msra.mxu0 %v886
    %1165 = vmatpush.bf16.msra.mxu0 %v885
    %1166 = vmatpush.bf16.msra.mxu0 %v884
    %1167 = vmatpush.bf16.msra.mxu0 %v883
    %1168 = vmatpush.bf16.msra.mxu0 %v882
    %1169 = vmatpush.bf16.msra.mxu0 %v881
    %1170 = vmatmul.bf16.gmra.mxu0 %v62
    %v1171 = vpop.f32.mrf.mxu0
    %v1172 = vadd.f32 %v1159, %v1171
    %v1173 = vpop.f32.mrf.mxu0
    %1174 = vdwg.mxu0
    %1175 = vmatpush.bf16.msra.mxu0 %v896
    %1176 = vmatpush.bf16.msra.mxu0 %v895
    %1177 = vmatpush.bf16.msra.mxu0 %v894
    %1178 = vmatpush.bf16.msra.mxu0 %v893
    %1179 = vmatpush.bf16.msra.mxu0 %v892
    %1180 = vmatpush.bf16.msra.mxu0 %v891
    %1181 = vmatpush.bf16.msra.mxu0 %v890
    %1182 = vmatpush.bf16.msra.mxu0 %v889
    %1183 = vmatmul.bf16.gmra.mxu0 %v63
    %v1184 = vpop.f32.mrf.mxu0
    %v1185 = vadd.f32 %v1172, %v1184
    %v1186 = vpop.f32.mrf.mxu0
    %1187 = vdwg.mxu0
    %1188 = vmatpush.bf16.msra.mxu0 %v904
    %1189 = vmatpush.bf16.msra.mxu0 %v903
    %1190 = vmatpush.bf16.msra.mxu0 %v902
    %1191 = vmatpush.bf16.msra.mxu0 %v901
    %1192 = vmatpush.bf16.msra.mxu0 %v900
    %1193 = vmatpush.bf16.msra.mxu0 %v899
    %1194 = vmatpush.bf16.msra.mxu0 %v898
    %1195 = vmatpush.bf16.msra.mxu0 %v897
    %1196 = vmatmul.bf16.gmra.mxu0 %v64
    %v1197 = vpop.f32.mrf.mxu0
    %v1198 = vadd.f32 %v1185, %v1197
    %v1199 = vpop.f32.mrf.mxu0
    %1200 = vdwg.mxu0
    %1201 = vmatpush.bf16.msra.mxu0 %v912
    %1202 = vmatpush.bf16.msra.mxu0 %v911
    %1203 = vmatpush.bf16.msra.mxu0 %v910
    %1204 = vmatpush.bf16.msra.mxu0 %v909
    %1205 = vmatpush.bf16.msra.mxu0 %v908
    %1206 = vmatpush.bf16.msra.mxu0 %v907
    %1207 = vmatpush.bf16.msra.mxu0 %v906
    %1208 = vmatpush.bf16.msra.mxu0 %v905
    %1209 = vmatmul.bf16.gmra.mxu0 %v65
    %v1210 = vpop.f32.mrf.mxu0
    %v1211 = vadd.f32 %v1198, %v1210
    %v1212 = vpop.f32.mrf.mxu0
    %1213 = vdwg.mxu0
    %1214 = vmatpush.bf16.msra.mxu0 %v920
    %1215 = vmatpush.bf16.msra.mxu0 %v919
    %1216 = vmatpush.bf16.msra.mxu0 %v918
    %1217 = vmatpush.bf16.msra.mxu0 %v917
    %1218 = vmatpush.bf16.msra.mxu0 %v916
    %1219 = vmatpush.bf16.msra.mxu0 %v915
    %1220 = vmatpush.bf16.msra.mxu0 %v914
    %1221 = vmatpush.bf16.msra.mxu0 %v913
    %1222 = vmatmul.bf16.gmra.mxu0 %v66
    %v1223 = vpop.f32.mrf.mxu0
    %v1224 = vadd.f32 %v1211, %v1223
    %v1225 = vpop.f32.mrf.mxu0
    %1226 = vdwg.mxu0
    %1227 = vmatpush.bf16.msra.mxu0 %v928
    %1228 = vmatpush.bf16.msra.mxu0 %v927
    %1229 = vmatpush.bf16.msra.mxu0 %v926
    %1230 = vmatpush.bf16.msra.mxu0 %v925
    %1231 = vmatpush.bf16.msra.mxu0 %v924
    %1232 = vmatpush.bf16.msra.mxu0 %v923
    %1233 = vmatpush.bf16.msra.mxu0 %v922
    %1234 = vmatpush.bf16.msra.mxu0 %v921
    %1235 = vmatmul.bf16.gmra.mxu0 %v67
    %v1236 = vpop.f32.mrf.mxu0
    %v1237 = vadd.f32 %v1224, %v1236
    %v1238 = vpop.f32.mrf.mxu0
    %1239 = vdwg.mxu0
    %1240 = vmatpush.bf16.msra.mxu0 %v936
    %1241 = vmatpush.bf16.msra.mxu0 %v935
    %1242 = vmatpush.bf16.msra.mxu0 %v934
    %1243 = vmatpush.bf16.msra.mxu0 %v933
    %1244 = vmatpush.bf16.msra.mxu0 %v932
    %1245 = vmatpush.bf16.msra.mxu0 %v931
    %1246 = vmatpush.bf16.msra.mxu0 %v930
    %1247 = vmatpush.bf16.msra.mxu0 %v929
    %1248 = vmatmul.bf16.gmra.mxu0 %v68
    %v1249 = vpop.f32.mrf.mxu0
    %v1250 = vadd.f32 %v1237, %v1249
    %v1251 = vpop.f32.mrf.mxu0
    %1252 = vdwg.mxu0
    %1253 = vmatpush.bf16.msra.mxu0 %v944
    %1254 = vmatpush.bf16.msra.mxu0 %v943
    %1255 = vmatpush.bf16.msra.mxu0 %v942
    %1256 = vmatpush.bf16.msra.mxu0 %v941
    %1257 = vmatpush.bf16.msra.mxu0 %v940
    %1258 = vmatpush.bf16.msra.mxu0 %v939
    %1259 = vmatpush.bf16.msra.mxu0 %v938
    %1260 = vmatpush.bf16.msra.mxu0 %v937
    %1261 = vmatmul.bf16.gmra.mxu0 %v69
    %v1262 = vpop.f32.mrf.mxu0
    %v1263 = vadd.f32 %v1250, %v1262
    %v1264 = vpop.f32.mrf.mxu0
    %1265 = vdwg.mxu0
    %1266 = vmatpush.bf16.msra.mxu0 %v952
    %1267 = vmatpush.bf16.msra.mxu0 %v951
    %1268 = vmatpush.bf16.msra.mxu0 %v950
    %1269 = vmatpush.bf16.msra.mxu0 %v949
    %1270 = vmatpush.bf16.msra.mxu0 %v948
    %1271 = vmatpush.bf16.msra.mxu0 %v947
    %1272 = vmatpush.bf16.msra.mxu0 %v946
    %1273 = vmatpush.bf16.msra.mxu0 %v945
    %1274 = vmatmul.bf16.gmra.mxu0 %v70
    %v1275 = vpop.f32.mrf.mxu0
    %v1276 = vadd.f32 %v1263, %v1275
    %v1277 = vpop.f32.mrf.mxu0
    %1278 = vdwg.mxu0
    %1279 = vmatpush.bf16.msra.mxu0 %v960
    %1280 = vmatpush.bf16.msra.mxu0 %v959
    %1281 = vmatpush.bf16.msra.mxu0 %v958
    %1282 = vmatpush.bf16.msra.mxu0 %v957
    %1283 = vmatpush.bf16.msra.mxu0 %v956
    %1284 = vmatpush.bf16.msra.mxu0 %v955
    %1285 = vmatpush.bf16.msra.mxu0 %v954
    %1286 = vmatpush.bf16.msra.mxu0 %v953
    %1287 = vmatmul.bf16.gmra.mxu0 %v71
    %v1288 = vpop.f32.mrf.mxu0
    %v1289 = vadd.f32 %v1276, %v1288
    %v1290 = vpop.f32.mrf.mxu0
    %1291 = vdwg.mxu0
    %1292 = vmatpush.bf16.msra.mxu0 %v968
    %1293 = vmatpush.bf16.msra.mxu0 %v967
    %1294 = vmatpush.bf16.msra.mxu0 %v966
    %1295 = vmatpush.bf16.msra.mxu0 %v965
    %1296 = vmatpush.bf16.msra.mxu0 %v964
    %1297 = vmatpush.bf16.msra.mxu0 %v963
    %1298 = vmatpush.bf16.msra.mxu0 %v962
    %1299 = vmatpush.bf16.msra.mxu0 %v961
    %1300 = vmatmul.bf16.gmra.mxu0 %v72
    %v1301 = vpop.f32.mrf.mxu0
    %v1302 = vadd.f32 %v1289, %v1301
    %v1303 = vpop.f32.mrf.mxu0
    %1304 = vdwg.mxu0
    %1305 = vst [vmem:[#allocation2] sm:$0x3] %v1302
    // Predicated region
    $region10: #{baseline_head_forward.3} parent=1 // pred_check
      _
    $region11: #{baseline_head_forward.3} parent=1 // pred_check_branch
      %1307 = sbr.rel (0) target = $region13
    $region12: #{baseline_head_forward.3} parent=1 // pred_region
      %1309 = vsyncadd [#allocation3], 0
      %s1311 = sshll.u32 [#allocation2], 4
      %s1312 = int_to_ptr.vmem [resolvable:$true] %s1311
      %s1313 = sshll.u32 %s2, 4
      %s1314 = int_to_ptr.hbm [resolvable:$true] %s1313
      %1316 = dma.vmem_to_hbm [thread:$0]  %s1312, 32, %s1314, [#allocation3]
    $region13: #{baseline_head_forward.3} parent=1 // pred_fallthru
      _
    // Predicated region
    $region14: #{baseline_head_forward.3} parent=1 // pred_check
      _
    $region15: #{baseline_head_forward.3} parent=1 // pred_check_branch
      %1318 = sbr.rel (0) target = $region17
    $region16: #{baseline_head_forward.3} parent=1 // pred_region
      %1320 = dma.done [#allocation3], 32
    $region17: #{baseline_head_forward.3} parent=1 // pred_fallthru
      _
    %1321 = vsyncpa [#allocation3], 1

</llo_original>
